<compile_context>
chip_gen: v5e
topology: v5e:2x2
jax: 0.10.0
libtpu: 0.0.40
codegen_flags: <defaults>
</compile_context>

<pallas_src>
import math

import jax
import jax.numpy as jnp
from jax.experimental import pallas as pl
from jax.experimental.pallas import tpu as pltpu

STATE_DIM = 16
ACTION_DIM = 8
TIME_EMB = 256          # frequency_embedding_size == time_embedding_size
HIDDEN = 256
HALF = TIME_EMB // 2    # 128 cos + 128 sin frequencies
IN_PAD = 32             # lane-padded fused input width: [t | a | state | 0]
OUT_PAD = 128           # lane-dense padded output width (>= ACTION_DIM)


def _round_up(x, m):
    return (x + m - 1) // m * m


def _policy_kernel(x_ref, freqs_ref,
                   wt1_ref, bt1_ref,
                   w1t_ref, w1as_ref, b1_ref,
                   w2_ref, b2_ref, w3_ref, b3_ref,
                   out_ref):
    f32, bf16 = jnp.float32, jnp.bfloat16

    x_in = x_ref[...]                                    # (TM, 32) f32
    t_col = x_in[:, 0:1]                                 # (TM, 1)  timestep

    # ---- fused sinusoidal timestep embedding (phases stay in f32) ----
    args = t_col * freqs_ref[...]                        # (TM, 128)
    cs = jnp.concatenate([jnp.cos(args), jnp.sin(args)], axis=-1).astype(bf16)

    # ---- TimestepEmbedder fc1 + SiLU: single K=256 MXU pass ----
    h = jnp.dot(cs, wt1_ref[...], preferred_element_type=f32) + bt1_ref[...]
    h = h * jax.nn.sigmoid(h)                            # SiLU in f32

    # ---- fc1, with embedder fc2 folded into the t_emb slice ----
    # w1t_ref = wt2 @ w1[t_emb rows];  b1_ref = b1 + bt2 @ w1[t_emb rows].
    # w1as_ref has zero rows for the t / pad lanes of x_in, so the fused
    # (TM, 32) dot is exact.
    x = (jnp.dot(h.astype(bf16), w1t_ref[...], preferred_element_type=f32)
         + jnp.dot(x_in.astype(bf16), w1as_ref[...], preferred_element_type=f32)
         + b1_ref[...])
    x = jnp.maximum(x, 0.0)                              # ReLU

    # ---- fc2 + ReLU ----
    x = jnp.dot(x.astype(bf16), w2_ref[...], preferred_element_type=f32) + b2_ref[...]
    x = jnp.maximum(x, 0.0)

    # TODO(synk): use_normalize branch (a / ||a||) not implemented; module
    #             default is use_normalize=False.

    # ---- fc3 (zero-padded to 128 lanes, bf16 store) ----
    out_ref[...] = (jnp.dot(x.astype(bf16), w3_ref[...],
                            preferred_element_type=f32)
                    + b3_ref[...]).astype(out_ref.dtype)


def init_params(key):
    """Deterministic PyTorch-Linear-style uniform init. Weights are (in, out)."""
    def linear(k, fan_in, fan_out):
        kw, kb = jax.random.split(k)
        bound = 1.0 / math.sqrt(fan_in)
        w = jax.random.uniform(kw, (fan_in, fan_out), jnp.float32, -bound, bound)
        b = jax.random.uniform(kb, (1, fan_out), jnp.float32, -bound, bound)
        return w, b

    keys = jax.random.split(key, 5)
    wt1, bt1 = linear(keys[0], TIME_EMB, HIDDEN)          # embedder fc1
    wt2, bt2 = linear(keys[1], HIDDEN, HIDDEN)            # embedder fc2
    w1, b1 = linear(keys[2], ACTION_DIM + TIME_EMB + STATE_DIM, HIDDEN)
    w2, b2 = linear(keys[3], HIDDEN, HIDDEN)
    w3, b3 = linear(keys[4], HIDDEN, ACTION_DIM)
    return dict(wt1=wt1, bt1=bt1, wt2=wt2, bt2=bt2,
                w1=w1, b1=b1, w2=w2, b2=b2, w3=w3, b3=b3)


def prepare_kernel_params(p):
    """Repack logical f32 params into the kernel layout (bf16 weights, folds)."""
    bf16 = jnp.bfloat16
    w1a = p["w1"][:ACTION_DIM]
    w1t = p["w1"][ACTION_DIM:ACTION_DIM + TIME_EMB]
    w1s = p["w1"][ACTION_DIM + TIME_EMB:]

    # Fold embedder fc2 into fc1's t_emb slice (product/bias computed in f32).
    w1t_fused = jnp.dot(p["wt2"], w1t, preferred_element_type=jnp.float32)
    b1_fused = p["b1"] + jnp.dot(p["bt2"], w1t, preferred_element_type=jnp.float32)

    # fc1 weights for the fused [t | a | state | pad] input: t / pad rows = 0.
    w1as = jnp.zeros((IN_PAD, HIDDEN), jnp.float32)
    w1as = w1as.at[1:1 + ACTION_DIM].set(w1a)
    w1as = w1as.at[1 + ACTION_DIM:1 + ACTION_DIM + STATE_DIM].set(w1s)

    # fc3 zero-padded to 128 output lanes for unmasked lane-dense stores.
    w3p = jnp.zeros((HIDDEN, OUT_PAD), jnp.float32).at[:, :ACTION_DIM].set(p["w3"])
    b3p = jnp.zeros((1, OUT_PAD), jnp.float32).at[:, :ACTION_DIM].set(p["b3"])

    return dict(
        wt1=p["wt1"].astype(bf16), bt1=p["bt1"],
        w1t=w1t_fused.astype(bf16), w1as=w1as.astype(bf16), b1=b1_fused,
        w2=p["w2"].astype(bf16), b2=p["b2"],
        w3=w3p.astype(bf16), b3=b3p,
    )


def _pick_tile(batch, tile_m):
    """Batch-tile rows: as large as allowed, but >=2 grid steps for big B."""
    bp8 = _round_up(batch, 8)
    tm = min(tile_m, bp8)
    # For larger batches keep at least 2 grid steps so the "parallel" axis
    # can be sharded across both TensorCores on v7x.
    if bp8 > 256:
        tm = min(tm, _round_up((batch + 1) // 2, 8))
    return max(tm, 8)


def diffusion_policy_forward(a, t, state, params, *, tile_m=1024):
    """Pallas implementation of DiffusionPolicy.forward."""
    kp = prepare_kernel_params(params)
    B = a.shape[0]

    freqs = jnp.exp(
        -math.log(10000.0) * jnp.arange(HALF, dtype=jnp.float32) / HALF
    ).reshape(1, HALF)

    # Single fused activation input stream: [t | a | state | zero-pad] (B, 32).
    x_in = jnp.zeros((B, IN_PAD), jnp.float32)
    x_in = x_in.at[:, 0].set(t.astype(jnp.float32))
    x_in = x_in.at[:, 1:1 + ACTION_DIM].set(a.astype(jnp.float32))
    x_in = x_in.at[:, 1 + ACTION_DIM:1 + ACTION_DIM + STATE_DIM].set(
        state.astype(jnp.float32))

    TM = _pick_tile(B, tile_m)
    Bp = _round_up(B, TM)
    if Bp != B:
        x_in = jnp.pad(x_in, ((0, Bp - B), (0, 0)))   # padded rows: t=a=state=0

    def res_spec(shape):                 # VMEM-resident across all grid steps
        return pl.BlockSpec(shape, lambda i: (0, 0))

    operands = (x_in, freqs,
                kp["wt1"], kp["bt1"],
                kp["w1t"], kp["w1as"], kp["b1"],
                kp["w2"], kp["b2"], kp["w3"], kp["b3"])
    in_specs = ([pl.BlockSpec((TM, IN_PAD), lambda i: (i, 0))]
                + [res_spec(op.shape) for op in operands[1:]])

    flops = 2 * Bp * (TIME_EMB * HIDDEN          # embedder fc1 (K=256)
                      + HIDDEN * HIDDEN          # fused (embedder fc2 . fc1-t)
                      + IN_PAD * HIDDEN          # fc1 [t|a|state|pad] pass
                      + HIDDEN * HIDDEN          # fc2
                      + HIDDEN * OUT_PAD)        # fc3 (padded)
    bytes_in = sum(int(op.size) * op.dtype.itemsize for op in operands)
    bytes_out = Bp * OUT_PAD * 2                 # bf16 output
    cost = pl.CostEstimate(flops=int(flops),
                           transcendentals=int(Bp * (TIME_EMB + HIDDEN)),
                           bytes_accessed=int(bytes_in + bytes_out))

    out = pl.pallas_call(
        _policy_kernel,
        out_shape=jax.ShapeDtypeStruct((Bp, OUT_PAD), jnp.bfloat16),
        grid=(Bp // TM,),
        in_specs=in_specs,
        out_specs=pl.BlockSpec((TM, OUT_PAD), lambda i: (i, 0)),
        compiler_params=pltpu.CompilerParams(
            dimension_semantics=("parallel",),       # shards across TCs on v7x
            vmem_limit_bytes=32 * 1024 * 1024),      # right-sized for v7x 64 MiB
        cost_estimate=cost,
    )(*operands)

    return out[:B, :ACTION_DIM].astype(jnp.float32)


def reference_forward(a, t, state, params):
    """Pure-JAX reference matching the PyTorch module semantics.

    Uses the same bf16-at-dot-boundary / f32-accumulate precision policy as
    the kernel so the comparison is tight; structurally it keeps the original
    (unfused) TimestepEmbedder -> fc1 -> fc2 -> fc3 graph.
    """
    f32, bf16 = jnp.float32, jnp.bfloat16
    freqs = jnp.exp(-math.log(10000.0) * jnp.arange(HALF, dtype=f32) / HALF)
    args = t.astype(f32)[:, None] * freqs[None, :]
    tfreq = jnp.concatenate([jnp.cos(args), jnp.sin(args)], axis=-1)

    def dot(x, w):
        return jnp.dot(x.astype(bf16), w.astype(bf16), preferred_element_type=f32)

    h = dot(tfreq, params["wt1"]) + params["bt1"]
    h = h * jax.nn.sigmoid(h)
    t_emb = dot(h, params["wt2"]) + params["bt2"]
    x = jnp.concatenate([a, t_emb, state], axis=1)
    x = jnp.maximum(dot(x, params["w1"]) + params["b1"], 0.0)
    x = jnp.maximum(dot(x, params["w2"]) + params["b2"], 0.0)
    return dot(x, params["w3"]) + params["b3"]


if __name__ == "__main__":
    key = jax.random.PRNGKey(0)
    kparam, ka, kt, ks = jax.random.split(key, 4)

    B = 2
    params = init_params(kparam)
    a = jax.random.normal(ka, (B, ACTION_DIM), jnp.float32)
    t = jax.random.uniform(kt, (B,), jnp.float32)        # fractional timesteps
    state = jax.random.normal(ks, (B, STATE_DIM), jnp.float32)

    out = jax.block_until_ready(diffusion_policy_forward(a, t, state, params))
    ref = jax.block_until_ready(reference_forward(a, t, state, params))

    assert out.shape == (B, ACTION_DIM)
    err = float(jnp.max(jnp.abs(out - ref)))
    assert err < 1e-2, f"max abs err = {err}"
    print("KERNEL_OK")
</pallas_src>

<mosaic_0001>
module attributes {stable_mosaic.version = 11 : i64} {
  func.func @_policy_kernel(%arg0: i32, %arg1: memref<8x32xf32, #tpu.memory_space<vmem>>, %arg2: memref<1x128xf32, #tpu.memory_space<vmem>>, %arg3: memref<256x256xbf16, #tpu.memory_space<vmem>>, %arg4: memref<1x256xf32, #tpu.memory_space<vmem>>, %arg5: memref<256x256xbf16, #tpu.memory_space<vmem>>, %arg6: memref<32x256xbf16, #tpu.memory_space<vmem>>, %arg7: memref<1x256xf32, #tpu.memory_space<vmem>>, %arg8: memref<256x256xbf16, #tpu.memory_space<vmem>>, %arg9: memref<1x256xf32, #tpu.memory_space<vmem>>, %arg10: memref<256x128xbf16, #tpu.memory_space<vmem>>, %arg11: memref<1x128xf32, #tpu.memory_space<vmem>>, %arg12: memref<8x128xbf16, #tpu.memory_space<vmem>>) attributes {dimension_semantics = [#tpu.dimension_semantics<parallel>], iteration_bounds = array<i64: 1>, scalar_prefetch = 0 : i64, scratch_operands = 0 : i64, tpu.core_type = #tpu.core_type<tc>, window_params = [{transform_indices = @transform_0, window_bounds = array<i64: 8, 32>}, {pipeline_mode = #tpu.pipeline_mode<synchronous>, transform_indices = @transform_1, window_bounds = array<i64: 1, 128>}, {pipeline_mode = #tpu.pipeline_mode<synchronous>, transform_indices = @transform_2, window_bounds = array<i64: 256, 256>}, {pipeline_mode = #tpu.pipeline_mode<synchronous>, transform_indices = @transform_3, window_bounds = array<i64: 1, 256>}, {pipeline_mode = #tpu.pipeline_mode<synchronous>, transform_indices = @transform_4, window_bounds = array<i64: 256, 256>}, {pipeline_mode = #tpu.pipeline_mode<synchronous>, transform_indices = @transform_5, window_bounds = array<i64: 32, 256>}, {pipeline_mode = #tpu.pipeline_mode<synchronous>, transform_indices = @transform_6, window_bounds = array<i64: 1, 256>}, {pipeline_mode = #tpu.pipeline_mode<synchronous>, transform_indices = @transform_7, window_bounds = array<i64: 256, 256>}, {pipeline_mode = #tpu.pipeline_mode<synchronous>, transform_indices = @transform_8, window_bounds = array<i64: 1, 256>}, {pipeline_mode = #tpu.pipeline_mode<synchronous>, transform_indices = @transform_9, window_bounds = array<i64: 256, 128>}, {pipeline_mode = #tpu.pipeline_mode<synchronous>, transform_indices = @transform_10, window_bounds = array<i64: 1, 128>}, {transform_indices = @transform_11, window_bounds = array<i64: 8, 128>}]} {
    %c0 = arith.constant 0 : index
    %c0_0 = arith.constant 0 : index
    %0 = vector.load %arg1[%c0, %c0_0] : memref<8x32xf32, #tpu.memory_space<vmem>>, vector<8x32xf32>
    %1 = vector.extract_strided_slice %0 {offsets = [0, 0], sizes = [8, 1], strides = [1, 1]} : vector<8x32xf32> to vector<8x1xf32>
    %c0_1 = arith.constant 0 : index
    %c0_2 = arith.constant 0 : index
    %2 = vector.load %arg2[%c0_1, %c0_2] : memref<1x128xf32, #tpu.memory_space<vmem>>, vector<1x128xf32>
    %3 = vector.broadcast %1 : vector<8x1xf32> to vector<8x128xf32>
    %4 = vector.broadcast %2 : vector<1x128xf32> to vector<8x128xf32>
    %5 = arith.mulf %3, %4 : vector<8x128xf32>
    %6 = math.cos %5 : vector<8x128xf32>
    %7 = math.sin %5 : vector<8x128xf32>
    %8 = tpu.concatenate %6, %7 in 1 : vector<8x128xf32>, vector<8x128xf32> -> vector<8x256xf32>
    %9 = arith.truncf %8 : vector<8x256xf32> to vector<8x256xbf16>
    %c0_3 = arith.constant 0 : index
    %c0_4 = arith.constant 0 : index
    %10 = vector.load %arg3[%c0_3, %c0_4] : memref<256x256xbf16, #tpu.memory_space<vmem>>, vector<256x256xbf16>
    %cst = arith.constant dense<0.000000e+00> : vector<8x256xf32>
    %11 = tpu.matmul %9, %10, %cst {dimension_numbers = #tpu.dot_dimension_numbers<[1], [0], [0], [1], [0, 0, 1, 1], [], []>} : vector<8x256xbf16>, vector<256x256xbf16>, vector<8x256xf32> -> vector<8x256xf32>
    %c0_5 = arith.constant 0 : index
    %c0_6 = arith.constant 0 : index
    %12 = vector.load %arg4[%c0_5, %c0_6] : memref<1x256xf32, #tpu.memory_space<vmem>>, vector<1x256xf32>
    %13 = vector.broadcast %12 : vector<1x256xf32> to vector<8x256xf32>
    %14 = arith.addf %11, %13 : vector<8x256xf32>
    %15 = arith.negf %14 : vector<8x256xf32>
    %16 = math.exp %15 : vector<8x256xf32>
    %cst_7 = arith.constant 1.000000e+00 : f32
    %17 = vector.broadcast %cst_7 : f32 to vector<8x256xf32>
    %18 = arith.addf %17, %16 : vector<8x256xf32>
    %19 = arith.divf %17, %18 : vector<8x256xf32>
    %20 = arith.mulf %14, %19 : vector<8x256xf32>
    %21 = arith.truncf %20 : vector<8x256xf32> to vector<8x256xbf16>
    %c0_8 = arith.constant 0 : index
    %c0_9 = arith.constant 0 : index
    %22 = vector.load %arg5[%c0_8, %c0_9] : memref<256x256xbf16, #tpu.memory_space<vmem>>, vector<256x256xbf16>
    %cst_10 = arith.constant dense<0.000000e+00> : vector<8x256xf32>
    %23 = tpu.matmul %21, %22, %cst_10 {dimension_numbers = #tpu.dot_dimension_numbers<[1], [0], [0], [1], [0, 0, 1, 1], [], []>} : vector<8x256xbf16>, vector<256x256xbf16>, vector<8x256xf32> -> vector<8x256xf32>
    %24 = arith.truncf %0 : vector<8x32xf32> to vector<8x32xbf16>
    %c0_11 = arith.constant 0 : index
    %c0_12 = arith.constant 0 : index
    %25 = vector.load %arg6[%c0_11, %c0_12] : memref<32x256xbf16, #tpu.memory_space<vmem>>, vector<32x256xbf16>
    %cst_13 = arith.constant dense<0.000000e+00> : vector<8x256xf32>
    %26 = tpu.matmul %24, %25, %cst_13 {dimension_numbers = #tpu.dot_dimension_numbers<[1], [0], [0], [1], [0, 0, 1, 1], [], []>} : vector<8x32xbf16>, vector<32x256xbf16>, vector<8x256xf32> -> vector<8x256xf32>
    %27 = arith.addf %23, %26 : vector<8x256xf32>
    %c0_14 = arith.constant 0 : index
    %c0_15 = arith.constant 0 : index
    %28 = vector.load %arg7[%c0_14, %c0_15] : memref<1x256xf32, #tpu.memory_space<vmem>>, vector<1x256xf32>
    %29 = vector.broadcast %28 : vector<1x256xf32> to vector<8x256xf32>
    %30 = arith.addf %27, %29 : vector<8x256xf32>
    %cst_16 = arith.constant 0.000000e+00 : f32
    %31 = vector.broadcast %cst_16 : f32 to vector<8x256xf32>
    %32 = arith.maximumf %30, %31 : vector<8x256xf32>
    %33 = arith.truncf %32 : vector<8x256xf32> to vector<8x256xbf16>
    %c0_17 = arith.constant 0 : index
    %c0_18 = arith.constant 0 : index
    %34 = vector.load %arg8[%c0_17, %c0_18] : memref<256x256xbf16, #tpu.memory_space<vmem>>, vector<256x256xbf16>
    %cst_19 = arith.constant dense<0.000000e+00> : vector<8x256xf32>
    %35 = tpu.matmul %33, %34, %cst_19 {dimension_numbers = #tpu.dot_dimension_numbers<[1], [0], [0], [1], [0, 0, 1, 1], [], []>} : vector<8x256xbf16>, vector<256x256xbf16>, vector<8x256xf32> -> vector<8x256xf32>
    %c0_20 = arith.constant 0 : index
    %c0_21 = arith.constant 0 : index
    %36 = vector.load %arg9[%c0_20, %c0_21] : memref<1x256xf32, #tpu.memory_space<vmem>>, vector<1x256xf32>
    %37 = vector.broadcast %36 : vector<1x256xf32> to vector<8x256xf32>
    %38 = arith.addf %35, %37 : vector<8x256xf32>
    %cst_22 = arith.constant 0.000000e+00 : f32
    %39 = vector.broadcast %cst_22 : f32 to vector<8x256xf32>
    %40 = arith.maximumf %38, %39 : vector<8x256xf32>
    %41 = arith.truncf %40 : vector<8x256xf32> to vector<8x256xbf16>
    %c0_23 = arith.constant 0 : index
    %c0_24 = arith.constant 0 : index
    %42 = vector.load %arg10[%c0_23, %c0_24] : memref<256x128xbf16, #tpu.memory_space<vmem>>, vector<256x128xbf16>
    %cst_25 = arith.constant dense<0.000000e+00> : vector<8x128xf32>
    %43 = tpu.matmul %41, %42, %cst_25 {dimension_numbers = #tpu.dot_dimension_numbers<[1], [0], [0], [1], [0, 0, 1, 1], [], []>} : vector<8x256xbf16>, vector<256x128xbf16>, vector<8x128xf32> -> vector<8x128xf32>
    %c0_26 = arith.constant 0 : index
    %c0_27 = arith.constant 0 : index
    %44 = vector.load %arg11[%c0_26, %c0_27] : memref<1x128xf32, #tpu.memory_space<vmem>>, vector<1x128xf32>
    %45 = vector.broadcast %44 : vector<1x128xf32> to vector<8x128xf32>
    %46 = arith.addf %43, %45 : vector<8x128xf32>
    %47 = arith.truncf %46 : vector<8x128xf32> to vector<8x128xbf16>
    %c0_28 = arith.constant 0 : index
    %c0_29 = arith.constant 0 : index
    %48 = vector.load %arg12[%c0_28, %c0_29] : memref<8x128xbf16, #tpu.memory_space<vmem>>, vector<8x128xbf16>
    tpu.vector_store %arg12[%c0_28, %c0_29], %47 {strides = array<i32>} : memref<8x128xbf16, #tpu.memory_space<vmem>>, vector<8x128xbf16>,
    return
  }
  func.func @transform_0(%arg0: i32) -> (i32, i32) {
    %c0_i32 = arith.constant 0 : i32
    %c0_i32_0 = arith.constant 0 : i32
    return %arg0, %c0_i32 : i32, i32
  }
  func.func @transform_1(%arg0: i32) -> (i32, i32) {
    %c0_i32 = arith.constant 0 : i32
    %c0_i32_0 = arith.constant 0 : i32
    %c0_i32_1 = arith.constant 0 : i32
    return %c0_i32, %c0_i32_0 : i32, i32
  }
  func.func @transform_2(%arg0: i32) -> (i32, i32) {
    %c0_i32 = arith.constant 0 : i32
    %c0_i32_0 = arith.constant 0 : i32
    %c0_i32_1 = arith.constant 0 : i32
    return %c0_i32, %c0_i32_0 : i32, i32
  }
  func.func @transform_3(%arg0: i32) -> (i32, i32) {
    %c0_i32 = arith.constant 0 : i32
    %c0_i32_0 = arith.constant 0 : i32
    %c0_i32_1 = arith.constant 0 : i32
    return %c0_i32, %c0_i32_0 : i32, i32
  }
  func.func @transform_4(%arg0: i32) -> (i32, i32) {
    %c0_i32 = arith.constant 0 : i32
    %c0_i32_0 = arith.constant 0 : i32
    %c0_i32_1 = arith.constant 0 : i32
    return %c0_i32, %c0_i32_0 : i32, i32
  }
  func.func @transform_5(%arg0: i32) -> (i32, i32) {
    %c0_i32 = arith.constant 0 : i32
    %c0_i32_0 = arith.constant 0 : i32
    %c0_i32_1 = arith.constant 0 : i32
    return %c0_i32, %c0_i32_0 : i32, i32
  }
  func.func @transform_6(%arg0: i32) -> (i32, i32) {
    %c0_i32 = arith.constant 0 : i32
    %c0_i32_0 = arith.constant 0 : i32
    %c0_i32_1 = arith.constant 0 : i32
    return %c0_i32, %c0_i32_0 : i32, i32
  }
  func.func @transform_7(%arg0: i32) -> (i32, i32) {
    %c0_i32 = arith.constant 0 : i32
    %c0_i32_0 = arith.constant 0 : i32
    %c0_i32_1 = arith.constant 0 : i32
    return %c0_i32, %c0_i32_0 : i32, i32
  }
  func.func @transform_8(%arg0: i32) -> (i32, i32) {
    %c0_i32 = arith.constant 0 : i32
    %c0_i32_0 = arith.constant 0 : i32
    %c0_i32_1 = arith.constant 0 : i32
    return %c0_i32, %c0_i32_0 : i32, i32
  }
  func.func @transform_9(%arg0: i32) -> (i32, i32) {
    %c0_i32 = arith.constant 0 : i32
    %c0_i32_0 = arith.constant 0 : i32
    %c0_i32_1 = arith.constant 0 : i32
    return %c0_i32, %c0_i32_0 : i32, i32
  }
  func.func @transform_10(%arg0: i32) -> (i32, i32) {
    %c0_i32 = arith.constant 0 : i32
    %c0_i32_0 = arith.constant 0 : i32
    %c0_i32_1 = arith.constant 0 : i32
    return %c0_i32, %c0_i32_0 : i32, i32
  }
  func.func @transform_11(%arg0: i32) -> (i32, i32) {
    %c0_i32 = arith.constant 0 : i32
    %c0_i32_0 = arith.constant 0 : i32
    return %arg0, %c0_i32 : i32, i32
  }
}

</mosaic_0001>

<llo_original>
// kernel: tpu_custom_call.1
$region0: #{tpu_custom_call.1}
  #allocation0 [shape = 'u32[]', space=smem, size = 0x4, offset = 0x4, fixed_abs, tag = 'smem constant byte address 0x4 - core index']
  #allocation1 [shape = 'u32[72,128]{1,0:T(1,128)}', space=vmem, size = 0x9000, scoped, tag = 'internal scratch']
  %s0 = inlined_call_operand.hbm [shape: f32[8,32], index: 0, kind: input, shape index: {}]
  %s1 = inlined_call_operand.hbm [shape: f32[1,128], index: 1, kind: input, shape index: {}]
  %s2 = inlined_call_operand.hbm [shape: bf16[256,256], index: 2, kind: input, shape index: {}]
  %s3 = inlined_call_operand.vmem [shape: f32[1,256], index: 3, kind: input, shape index: {}]
  %s4 = inlined_call_operand.hbm [shape: bf16[256,256], index: 4, kind: input, shape index: {}]
  %s5 = inlined_call_operand.hbm [shape: bf16[32,256], index: 5, kind: input, shape index: {}]
  %s6 = inlined_call_operand.vmem [shape: f32[1,256], index: 6, kind: input, shape index: {}]
  %s7 = inlined_call_operand.hbm [shape: bf16[256,256], index: 7, kind: input, shape index: {}]
  %s8 = inlined_call_operand.vmem [shape: f32[1,256], index: 8, kind: input, shape index: {}]
  %s9 = inlined_call_operand.hbm [shape: bf16[256,128], index: 9, kind: input, shape index: {}]
  %s10 = inlined_call_operand.vmem [shape: f32[1,128], index: 10, kind: input, shape index: {}]
  %s11 = inlined_call_operand.hbm [shape: bf16[8,128], index: 11, kind: output, shape index: {}]
  %s12 = sld [smem:[#allocation0]]
  $region82: #{tpu_custom_call.1} parent=0
    _
  %s14 = ssub.s32 1, %s12
  %s15 = scalar_select 0, %s14, %s12
  $region1: #{tpu_custom_call.1} parent=0
    #allocation2 [shape = 'u8[4096]{0}', space=vmem, size = 0x1000, scoped, tag = 'input window, operand 0, single buffered']
    #allocation3 [shape = 's32[1]{0}', space=sflag, size = 0x4, scoped, tag = 'scoped memory for tpu_custom_call.1']
    #allocation4 [shape = 's32[1]{0}', space=sflag, size = 0x4, scoped, tag = 'scoped memory for tpu_custom_call.1']
    #allocation5 [shape = 'u8[512]{0}', space=vmem, size = 0x400, scoped, tag = 'input window, operand 1, single buffered']
    #allocation6 [shape = 's32[1]{0}', space=sflag, size = 0x4, scoped, tag = 'scoped memory for tpu_custom_call.1']
    #allocation7 [shape = 'u8[131072]{0}', space=vmem, size = 0x20000, scoped, tag = 'input window, operand 2, single buffered']
    #allocation8 [shape = 'u8[131072]{0}', space=vmem, size = 0x20000, scoped, tag = 'input window, operand 4, single buffered']
    #allocation9 [shape = 's32[1]{0}', space=sflag, size = 0x4, scoped, tag = 'scoped memory for tpu_custom_call.1']
    #allocation10 [shape = 'u8[16384]{0}', space=vmem, size = 0x4000, scoped, tag = 'input window, operand 5, single buffered']
    #allocation11 [shape = 'u8[131072]{0}', space=vmem, size = 0x20000, scoped, tag = 'input window, operand 7, single buffered']
    #allocation12 [shape = 's32[1]{0}', space=sflag, size = 0x4, scoped, tag = 'scoped memory for tpu_custom_call.1']
    #allocation13 [shape = 'u8[65536]{0}', space=vmem, size = 0x10000, scoped, tag = 'input window, operand 9, single buffered']
    #allocation14 [shape = 'u8[2048]{0}', space=vmem, size = 0x800, scoped, tag = 'output window, operand 0, single buffered']
    %16 = vsyncpa [#allocation3], 0
    %17 = vsyncpa [#allocation6], 0
    %18 = vsyncpa [#allocation9], 0
    %19 = vsyncpa [#allocation12], 0
    %20 = vsyncpa [#allocation4], 0
    // Predicated region
    $region2: #{tpu_custom_call.1} parent=1 // pred_check
      _
    $region3: #{tpu_custom_call.1} parent=1 // pred_check_branch
      %22 = sbr.rel (0) target = $region5
    $region4: #{tpu_custom_call.1} parent=1 // pred_region
      %24 = vsyncadd [#allocation3], 0
      %s26 = sshll.u32 %s0, 4
      %s27 = int_to_ptr.hbm [resolvable:$true] %s26
      %s28 = sshll.u32 [#allocation2], 4
      %s29 = int_to_ptr.vmem [resolvable:$true] %s28
      %31 = dma.hbm_to_vmem [thread:$0]  %s27, 128, %s29, [#allocation3]
    $region5: #{tpu_custom_call.1} parent=1 // pred_fallthru
      _
    // Predicated region
    $region6: #{tpu_custom_call.1} parent=1 // pred_check
      _
    $region7: #{tpu_custom_call.1} parent=1 // pred_check_branch
      %33 = sbr.rel (0) target = $region9
    $region8: #{tpu_custom_call.1} parent=1 // pred_region
      %35 = vsyncadd [#allocation6], 0
      %s37 = sshll.u32 %s1, 4
      %s38 = int_to_ptr.hbm [resolvable:$true] %s37
      %s39 = sshll.u32 [#allocation5], 4
      %s40 = int_to_ptr.vmem [resolvable:$true] %s39
      %42 = dma.hbm_to_vmem [thread:$0]  %s38, 16, %s40, [#allocation6]
    $region9: #{tpu_custom_call.1} parent=1 // pred_fallthru
      _
    // Predicated region
    $region10: #{tpu_custom_call.1} parent=1 // pred_check
      _
    $region11: #{tpu_custom_call.1} parent=1 // pred_check_branch
      %44 = sbr.rel (0) target = $region13
    $region12: #{tpu_custom_call.1} parent=1 // pred_region
      %46 = vsyncadd [#allocation6], 0
      %s47 = sshll.u32 %s2, 4
      %s48 = int_to_ptr.hbm [resolvable:$true] %s47
      %s49 = sshll.u32 [#allocation7], 4
      %s50 = int_to_ptr.vmem [resolvable:$true] %s49
      %55 = dma.hbm_to_vmem [thread:$0]  %s48, 4096, %s50, [#allocation6], 128, 128, 8
    $region13: #{tpu_custom_call.1} parent=1 // pred_fallthru
      _
    // Predicated region
    $region14: #{tpu_custom_call.1} parent=1 // pred_check
      _
    $region15: #{tpu_custom_call.1} parent=1 // pred_check_branch
      %57 = sbr.rel (0) target = $region17
    $region16: #{tpu_custom_call.1} parent=1 // pred_region
      _
    $region17: #{tpu_custom_call.1} parent=1 // pred_fallthru
      _
    // Predicated region
    $region18: #{tpu_custom_call.1} parent=1 // pred_check
      _
    $region19: #{tpu_custom_call.1} parent=1 // pred_check_branch
      %59 = sbr.rel (0) target = $region21
    $region20: #{tpu_custom_call.1} parent=1 // pred_region
      %61 = vsyncadd [#allocation9], 0
      %s62 = sshll.u32 %s4, 4
      %s63 = int_to_ptr.hbm [resolvable:$true] %s62
      %s64 = sshll.u32 [#allocation8], 4
      %s65 = int_to_ptr.vmem [resolvable:$true] %s64
      %70 = dma.hbm_to_vmem [thread:$0]  %s63, 4096, %s65, [#allocation9], 128, 128, 8
    $region21: #{tpu_custom_call.1} parent=1 // pred_fallthru
      _
    // Predicated region
    $region22: #{tpu_custom_call.1} parent=1 // pred_check
      _
    $region23: #{tpu_custom_call.1} parent=1 // pred_check_branch
      %72 = sbr.rel (0) target = $region25
    $region24: #{tpu_custom_call.1} parent=1 // pred_region
      %74 = vsyncadd [#allocation9], 0
      %s75 = sshll.u32 %s5, 4
      %s76 = int_to_ptr.hbm [resolvable:$true] %s75
      %s77 = sshll.u32 [#allocation10], 4
      %s78 = int_to_ptr.vmem [resolvable:$true] %s77
      %83 = dma.hbm_to_vmem [thread:$0]  %s76, 512, %s78, [#allocation9], 128, 128, 8
    $region25: #{tpu_custom_call.1} parent=1 // pred_fallthru
      _
    // Predicated region
    $region26: #{tpu_custom_call.1} parent=1 // pred_check
      _
    $region27: #{tpu_custom_call.1} parent=1 // pred_check_branch
      %85 = sbr.rel (0) target = $region29
    $region28: #{tpu_custom_call.1} parent=1 // pred_region
      _
    $region29: #{tpu_custom_call.1} parent=1 // pred_fallthru
      _
    // Predicated region
    $region30: #{tpu_custom_call.1} parent=1 // pred_check
      _
    $region31: #{tpu_custom_call.1} parent=1 // pred_check_branch
      %87 = sbr.rel (0) target = $region33
    $region32: #{tpu_custom_call.1} parent=1 // pred_region
      %89 = vsyncadd [#allocation12], 0
      %s90 = sshll.u32 %s7, 4
      %s91 = int_to_ptr.hbm [resolvable:$true] %s90
      %s92 = sshll.u32 [#allocation11], 4
      %s93 = int_to_ptr.vmem [resolvable:$true] %s92
      %98 = dma.hbm_to_vmem [thread:$0]  %s91, 4096, %s93, [#allocation12], 128, 128, 8
    $region33: #{tpu_custom_call.1} parent=1 // pred_fallthru
      _
    // Predicated region
    $region34: #{tpu_custom_call.1} parent=1 // pred_check
      _
    $region35: #{tpu_custom_call.1} parent=1 // pred_check_branch
      %100 = sbr.rel (0) target = $region37
    $region36: #{tpu_custom_call.1} parent=1 // pred_region
      _
    $region37: #{tpu_custom_call.1} parent=1 // pred_fallthru
      _
    // Predicated region
    $region38: #{tpu_custom_call.1} parent=1 // pred_check
      _
    $region39: #{tpu_custom_call.1} parent=1 // pred_check_branch
      %102 = sbr.rel (0) target = $region41
    $region40: #{tpu_custom_call.1} parent=1 // pred_region
      %104 = vsyncadd [#allocation12], 0
      %s105 = sshll.u32 %s9, 4
      %s106 = int_to_ptr.hbm [resolvable:$true] %s105
      %s107 = sshll.u32 [#allocation13], 4
      %s108 = int_to_ptr.vmem [resolvable:$true] %s107
      %113 = dma.hbm_to_vmem [thread:$0]  %s106, 2048, %s108, [#allocation12], 64, 64, 4
    $region41: #{tpu_custom_call.1} parent=1 // pred_fallthru
      _
    // Predicated region
    $region42: #{tpu_custom_call.1} parent=1 // pred_check
      _
    $region43: #{tpu_custom_call.1} parent=1 // pred_check_branch
      %115 = sbr.rel (0) target = $region45
    $region44: #{tpu_custom_call.1} parent=1 // pred_region
      _
    $region45: #{tpu_custom_call.1} parent=1 // pred_fallthru
      _
    // Predicated region
    $region46: #{tpu_custom_call.1} parent=1 // pred_check
      _
    $region47: #{tpu_custom_call.1} parent=1 // pred_check_branch
      %117 = sbr.rel (0) target = $region49
    $region48: #{tpu_custom_call.1} parent=1 // pred_region
      %119 = dma.done [#allocation3], 128
    $region49: #{tpu_custom_call.1} parent=1 // pred_fallthru
      _
    // Predicated region
    $region50: #{tpu_custom_call.1} parent=1 // pred_check
      _
    $region51: #{tpu_custom_call.1} parent=1 // pred_check_branch
      %121 = sbr.rel (0) target = $region53
    $region52: #{tpu_custom_call.1} parent=1 // pred_region
      %123 = dma.done [#allocation6], 16
    $region53: #{tpu_custom_call.1} parent=1 // pred_fallthru
      _
    // Predicated region
    $region54: #{tpu_custom_call.1} parent=1 // pred_check
      _
    $region55: #{tpu_custom_call.1} parent=1 // pred_check_branch
      %125 = sbr.rel (0) target = $region57
    $region56: #{tpu_custom_call.1} parent=1 // pred_region
      %127 = dma.done [#allocation6], 4096
    $region57: #{tpu_custom_call.1} parent=1 // pred_fallthru
      _
    // Predicated region
    $region58: #{tpu_custom_call.1} parent=1 // pred_check
      _
    $region59: #{tpu_custom_call.1} parent=1 // pred_check_branch
      %129 = sbr.rel (0) target = $region61
    $region60: #{tpu_custom_call.1} parent=1 // pred_region
      %131 = dma.done [#allocation9], 4096
    $region61: #{tpu_custom_call.1} parent=1 // pred_fallthru
      _
    // Predicated region
    $region62: #{tpu_custom_call.1} parent=1 // pred_check
      _
    $region63: #{tpu_custom_call.1} parent=1 // pred_check_branch
      %133 = sbr.rel (0) target = $region65
    $region64: #{tpu_custom_call.1} parent=1 // pred_region
      %135 = dma.done [#allocation9], 512
    $region65: #{tpu_custom_call.1} parent=1 // pred_fallthru
      _
    // Predicated region
    $region66: #{tpu_custom_call.1} parent=1 // pred_check
      _
    $region67: #{tpu_custom_call.1} parent=1 // pred_check_branch
      %137 = sbr.rel (0) target = $region69
    $region68: #{tpu_custom_call.1} parent=1 // pred_region
      %139 = dma.done [#allocation12], 4096
    $region69: #{tpu_custom_call.1} parent=1 // pred_fallthru
      _
    // Predicated region
    $region70: #{tpu_custom_call.1} parent=1 // pred_check
      _
    $region71: #{tpu_custom_call.1} parent=1 // pred_check_branch
      %141 = sbr.rel (0) target = $region73
    $region72: #{tpu_custom_call.1} parent=1 // pred_region
      %143 = dma.done [#allocation12], 2048
    $region73: #{tpu_custom_call.1} parent=1 // pred_fallthru
      _
    %v145 = vld [vmem:[#allocation2] sm:$0xff]
    %v146 = vld [vmem:[#allocation5] sm:$0x1]
    %148 = vset.pattern.permute.xlu0 0
    %149 = vperm.xlu0 %148, %v145
    %v150 = vpop.permute.xlu0 %149
    %v153 = vperm.slane %v146, 0
    %v155 = vmul.f32 %v150, %v153
    %v156 = vand.u32 2147483647, %v155
    %vm157 = vcmp.le.f32.partialorder %v156, 0.7853982
    %vm158 = vcmp.lt.s32.totalorder %v155, 0
    %v159 = vand.u32 %v155, 2139095040
    %v160 = vshrl.u32 %v159, 23
    %v161 = vsub.s32 %v160, 127
    %v162 = vand.u32 2147483647, %v155
    %v163 = vand.u32 %v162, 8388607
    %v164 = vor.u32 %v163, 8388608
    %v165 = vsub.s32 0, %v164
    %v166 = vadd.s32 %v161, 1
    %vm167 = vcmp.gt.s32.totalorder %v166, 0
    %v168 = vsel %vm167, %v166, 0
    %v169 = vshrl.u32 %v168, 5
    %v170 = vand.u32 %v168, 31
    %v171 = vsub.s32 32, %v170
    %v172 = vshrl.u32 683565275, %v171
    %v173 = vshll.u32 683565275, %v170
    %v174 = vshrl.u32 2475754826, %v171
    %v175 = vor.u32 %v173, %v174
    %v176 = vshll.u32 2475754826, %v170
    %v177 = vshrl.u32 2131351028, %v171
    %v178 = vor.u32 %v176, %v177
    %v179 = vshll.u32 2131351028, %v170
    %v180 = vshrl.u32 2102212464, %v171
    %v181 = vor.u32 %v179, %v180
    %v182 = vshll.u32 2102212464, %v170
    %v183 = vshrl.u32 920167782, %v171
    %v184 = vor.u32 %v182, %v183
    %v185 = vshll.u32 920167782, %v170
    %v186 = vshrl.u32 1326507024, %v171
    %v187 = vor.u32 %v185, %v186
    %vm188 = vcmp.lt.s32.totalorder %v169, 1
    %vm189 = vcmp.lt.s32.totalorder %v169, 2
    %vm190 = vcmp.lt.s32.totalorder %v169, 3
    %vm191 = vcmp.lt.s32.totalorder %v169, 4
    %v192 = vsel %vm188, %v172, %v175
    %v193 = vsel %vm191, %v181, 2102212464
    %v194 = vsel %vm190, %v178, %v193
    %v195 = vsel %vm189, %v192, %v194
    %v196 = vsel %vm188, %v175, %v178
    %v197 = vsel %vm191, %v184, 920167782
    %v198 = vsel %vm190, %v181, %v197
    %v199 = vsel %vm189, %v196, %v198
    %v200 = vsel %vm188, %v178, %v181
    %v201 = vsel %vm191, %v187, 1326507024
    %v202 = vsel %vm190, %v184, %v201
    %v203 = vsel %vm189, %v200, %v202
    %v204 = vshll.u32 %v164, 8
    %v205 = vand.u32 %v204, 65535
    %v206 = vshrl.u32 %v204, 16
    %v207 = vand.u32 %v203, 65535
    %v208 = vshrl.u32 %v203, 16
    %v209 = vmul.u32 %v205, %v207
    %v210 = vmul.u32 %v205, %v208
    %v211 = vmul.u32 %v206, %v207
    %v212 = vmul.u32 %v206, %v208
    %v213 = vshll.u32 %v210, 16
    %v214 = vshrl.u32 %v210, 16
    %v215 = vshll.u32 %v211, 16
    %v216 = vshrl.u32 %v211, 16
    %vm217 = vc.u32 %v209, %v213
    %v218 = vsel %vm217, 1, 0
    %v219 = vadd.s32 %v209, %v213
    %v220 = vadd.s32 %v212, %v218
    %vm221 = vc.u32 %v219, %v215
    %v222 = vsel %vm221, 1, 0
    %v223 = vadd.s32 %v219, %v215
    %v224 = vadd.s32 %v220, %v222
    %v225 = vadd.s32 %v224, %v214
    %v226 = vadd.s32 %v225, %v216
    %v227 = vand.u32 %v204, 65535
    %v228 = vshrl.u32 %v204, 16
    %v229 = vand.u32 %v199, 65535
    %v230 = vshrl.u32 %v199, 16
    %v231 = vmul.u32 %v227, %v229
    %v232 = vmul.u32 %v227, %v230
    %v233 = vmul.u32 %v228, %v229
    %v234 = vmul.u32 %v228, %v230
    %v235 = vshll.u32 %v232, 16
    %v236 = vshrl.u32 %v232, 16
    %v237 = vshll.u32 %v233, 16
    %v238 = vshrl.u32 %v233, 16
    %vm239 = vc.u32 %v231, %v235
    %v240 = vsel %vm239, 1, 0
    %v241 = vadd.s32 %v231, %v235
    %v242 = vadd.s32 %v234, %v240
    %vm243 = vc.u32 %v241, %v237
    %v244 = vsel %vm243, 1, 0
    %v245 = vadd.s32 %v241, %v237
    %v246 = vadd.s32 %v242, %v244
    %v247 = vadd.s32 %v246, %v236
    %v248 = vadd.s32 %v247, %v238
    %v249 = vmul.u32 %v204, %v195
    %v250 = vadd.s32 %v226, %v245
    %vm251 = vc.u32 %v226, %v245
    %v252 = vadd.s32 %v248, 1
    %v253 = vsel %vm251, %v252, %v248
    %v254 = vadd.s32 %v249, %v253
    %v255 = vadd.s32 %v254, 536870912
    %v256 = vshrl.u32 %v255, 30
    %v257 = vshll.u32 %v256, 30
    %v258 = vsub.s32 %v254, %v257
    %vm259 = vcmp.lt.s32.totalorder %v258, 0
    %v260 = vsub.s32 0, %v258
    %v261 = vsel %vm259, %v260, %v258
    %v262 = vclz %v261
    %v263 = vsub.s32 %v262, 2
    %vm264 = vcmp.gt.s32.totalorder 0, %v263
    %v265 = vsel %vm264, 0, %v263
    %v266 = vsub.s32 32, %v265
    %v267 = vshll.u32 %v258, %v265
    %v268 = vshrl.u32 %v250, %v266
    %v269 = vor.u32 %v267, %v268
    %v270 = vsub.s32 4294967266, %v265
    %v271 = vadd.s32 %v270, 127
    %v272 = vshll.u32 %v271, 23
    %v273 = vor.u32 4788187, %v272
    %v274 = vand.u32 2147483647, %v273
    %v276 = vcvt.s32.f32 %v269
    %v277 = vmul.f32 %v276, %v274
    %v278 = vxor.u32 %v277, 2147483648
    %v279 = vsel %vm158, %v278, %v277
    %v280 = vsub.s32 4, %v256
    %v281 = vsel %vm158, %v280, %v256
    %v282 = vsel %vm157, %v155, %v279
    %v283 = vsel %vm157, 0, %v281
    %v284 = vmul.f32 %v282, %v282
    %v285 = vmul.f32 %v284, -0.001358992
    %v286 = vadd.f32 %v285, 0.041655596
    %v287 = vmul.f32 %v284, %v286
    %v288 = vadd.f32 %v287, -0.4999988
    %v289 = vmul.f32 %v284, %v288
    %v290 = vadd.f32 1.0, %v289
    %v291 = vmul.f32 %v282, %v282
    %v292 = vmul.f32 %v291, -0.00019511016
    %v293 = vadd.f32 %v292, 0.008332121
    %v294 = vmul.f32 %v291, %v293
    %v295 = vadd.f32 %v294, -0.16666654
    %v296 = vmul.f32 %v291, %v295
    %v297 = vadd.f32 %v296, 1.0
    %v298 = vmul.f32 %v297, %v282
    %vm299 = vweird.f32 %v155
    %v300 = vand.u32 %v283, 3
    %vm301 = vcmp.lt.s32.totalorder %v300, 2
    %vm302 = vcmp.eq.s32.totalorder %v300, 0
    %v303 = vxor.u32 %v298, 2147483648
    %v304 = vsel %vm302, %v290, %v303
    %vm305 = vcmp.eq.s32.totalorder %v300, 2
    %v306 = vxor.u32 %v290, 2147483648
    %v307 = vsel %vm305, %v306, %v298
    %v308 = vsel %vm301, %v304, %v307
    %v309 = vsel %vm299, nan, %v308
    %v310 = vand.u32 2147483647, %v155
    %vm311 = vcmp.le.f32.partialorder %v310, 0.7853982
    %vm312 = vcmp.lt.s32.totalorder %v155, 0
    %v313 = vand.u32 %v155, 2139095040
    %v314 = vshrl.u32 %v313, 23
    %v315 = vsub.s32 %v314, 127
    %v316 = vand.u32 2147483647, %v155
    %v317 = vand.u32 %v316, 8388607
    %v318 = vor.u32 %v317, 8388608
    %v319 = vsub.s32 0, %v318
    %v320 = vadd.s32 %v315, 1
    %vm321 = vcmp.gt.s32.totalorder %v320, 0
    %v322 = vsel %vm321, %v320, 0
    %v323 = vshrl.u32 %v322, 5
    %v324 = vand.u32 %v322, 31
    %v325 = vsub.s32 32, %v324
    %v326 = vshrl.u32 683565275, %v325
    %v327 = vshll.u32 683565275, %v324
    %v328 = vshrl.u32 2475754826, %v325
    %v329 = vor.u32 %v327, %v328
    %v330 = vshll.u32 2475754826, %v324
    %v331 = vshrl.u32 2131351028, %v325
    %v332 = vor.u32 %v330, %v331
    %v333 = vshll.u32 2131351028, %v324
    %v334 = vshrl.u32 2102212464, %v325
    %v335 = vor.u32 %v333, %v334
    %v336 = vshll.u32 2102212464, %v324
    %v337 = vshrl.u32 920167782, %v325
    %v338 = vor.u32 %v336, %v337
    %v339 = vshll.u32 920167782, %v324
    %v340 = vshrl.u32 1326507024, %v325
    %v341 = vor.u32 %v339, %v340
    %vm342 = vcmp.lt.s32.totalorder %v323, 1
    %vm343 = vcmp.lt.s32.totalorder %v323, 2
    %vm344 = vcmp.lt.s32.totalorder %v323, 3
    %vm345 = vcmp.lt.s32.totalorder %v323, 4
    %v346 = vsel %vm342, %v326, %v329
    %v347 = vsel %vm345, %v335, 2102212464
    %v348 = vsel %vm344, %v332, %v347
    %v349 = vsel %vm343, %v346, %v348
    %v350 = vsel %vm342, %v329, %v332
    %v351 = vsel %vm345, %v338, 920167782
    %v352 = vsel %vm344, %v335, %v351
    %v353 = vsel %vm343, %v350, %v352
    %v354 = vsel %vm342, %v332, %v335
    %v355 = vsel %vm345, %v341, 1326507024
    %v356 = vsel %vm344, %v338, %v355
    %v357 = vsel %vm343, %v354, %v356
    %v358 = vshll.u32 %v318, 8
    %v359 = vand.u32 %v358, 65535
    %v360 = vshrl.u32 %v358, 16
    %v361 = vand.u32 %v357, 65535
    %v362 = vshrl.u32 %v357, 16
    %v363 = vmul.u32 %v359, %v361
    %v364 = vmul.u32 %v359, %v362
    %v365 = vmul.u32 %v360, %v361
    %v366 = vmul.u32 %v360, %v362
    %v367 = vshll.u32 %v364, 16
    %v368 = vshrl.u32 %v364, 16
    %v369 = vshll.u32 %v365, 16
    %v370 = vshrl.u32 %v365, 16
    %vm371 = vc.u32 %v363, %v367
    %v372 = vsel %vm371, 1, 0
    %v373 = vadd.s32 %v363, %v367
    %v374 = vadd.s32 %v366, %v372
    %vm375 = vc.u32 %v373, %v369
    %v376 = vsel %vm375, 1, 0
    %v377 = vadd.s32 %v373, %v369
    %v378 = vadd.s32 %v374, %v376
    %v379 = vadd.s32 %v378, %v368
    %v380 = vadd.s32 %v379, %v370
    %v381 = vand.u32 %v358, 65535
    %v382 = vshrl.u32 %v358, 16
    %v383 = vand.u32 %v353, 65535
    %v384 = vshrl.u32 %v353, 16
    %v385 = vmul.u32 %v381, %v383
    %v386 = vmul.u32 %v381, %v384
    %v387 = vmul.u32 %v382, %v383
    %v388 = vmul.u32 %v382, %v384
    %v389 = vshll.u32 %v386, 16
    %v390 = vshrl.u32 %v386, 16
    %v391 = vshll.u32 %v387, 16
    %v392 = vshrl.u32 %v387, 16
    %vm393 = vc.u32 %v385, %v389
    %v394 = vsel %vm393, 1, 0
    %v395 = vadd.s32 %v385, %v389
    %v396 = vadd.s32 %v388, %v394
    %vm397 = vc.u32 %v395, %v391
    %v398 = vsel %vm397, 1, 0
    %v399 = vadd.s32 %v395, %v391
    %v400 = vadd.s32 %v396, %v398
    %v401 = vadd.s32 %v400, %v390
    %v402 = vadd.s32 %v401, %v392
    %v403 = vmul.u32 %v358, %v349
    %v404 = vadd.s32 %v380, %v399
    %vm405 = vc.u32 %v380, %v399
    %v406 = vadd.s32 %v402, 1
    %v407 = vsel %vm405, %v406, %v402
    %v408 = vadd.s32 %v403, %v407
    %v409 = vadd.s32 %v408, 536870912
    %v410 = vshrl.u32 %v409, 30
    %v411 = vshll.u32 %v410, 30
    %v412 = vsub.s32 %v408, %v411
    %vm413 = vcmp.lt.s32.totalorder %v412, 0
    %v414 = vsub.s32 0, %v412
    %v415 = vsel %vm413, %v414, %v412
    %v416 = vclz %v415
    %v417 = vsub.s32 %v416, 2
    %vm418 = vcmp.gt.s32.totalorder 0, %v417
    %v419 = vsel %vm418, 0, %v417
    %v420 = vsub.s32 32, %v419
    %v421 = vshll.u32 %v412, %v419
    %v422 = vshrl.u32 %v404, %v420
    %v423 = vor.u32 %v421, %v422
    %v424 = vsub.s32 4294967266, %v419
    %v425 = vadd.s32 %v424, 127
    %v426 = vshll.u32 %v425, 23
    %v427 = vor.u32 4788187, %v426
    %v428 = vand.u32 2147483647, %v427
    %v430 = vcvt.s32.f32 %v423
    %v431 = vmul.f32 %v430, %v428
    %v432 = vxor.u32 %v431, 2147483648
    %v433 = vsel %vm312, %v432, %v431
    %v434 = vsub.s32 4, %v410
    %v435 = vsel %vm312, %v434, %v410
    %v436 = vsel %vm311, %v155, %v433
    %v437 = vsel %vm311, 0, %v435
    %v438 = vmul.f32 %v436, %v436
    %v439 = vmul.f32 %v438, -0.001358992
    %v440 = vadd.f32 %v439, 0.041655596
    %v441 = vmul.f32 %v438, %v440
    %v442 = vadd.f32 %v441, -0.4999988
    %v443 = vmul.f32 %v438, %v442
    %v444 = vadd.f32 1.0, %v443
    %v445 = vmul.f32 %v436, %v436
    %v446 = vmul.f32 %v445, -0.00019511016
    %v447 = vadd.f32 %v446, 0.008332121
    %v448 = vmul.f32 %v445, %v447
    %v449 = vadd.f32 %v448, -0.16666654
    %v450 = vmul.f32 %v445, %v449
    %v451 = vadd.f32 %v450, 1.0
    %v452 = vmul.f32 %v451, %v436
    %vm453 = vweird.f32 %v155
    %v454 = vadd.s32 %v437, 3
    %v455 = vand.u32 %v454, 3
    %vm456 = vcmp.lt.s32.totalorder %v455, 2
    %vm457 = vcmp.eq.s32.totalorder %v455, 0
    %v458 = vxor.u32 %v452, 2147483648
    %v459 = vsel %vm457, %v444, %v458
    %vm460 = vcmp.eq.s32.totalorder %v455, 2
    %v461 = vxor.u32 %v444, 2147483648
    %v462 = vsel %vm460, %v461, %v452
    %v463 = vsel %vm456, %v459, %v462
    %v464 = vsel %vm453, nan, %v463
    %v465 = vpack.c.bf16 %v309, %v309
    %v466 = vpack.c.bf16 %v464, %v464
    %v467 = vld [vmem:[#allocation7] sm:$0xff]
    %v468 = vld [vmem:[#allocation7 + $0x8] sm:$0xff]
    %v469 = vld [vmem:[#allocation7 + $0x10] sm:$0xff]
    %v470 = vld [vmem:[#allocation7 + $0x18] sm:$0xff]
    %v471 = vld [vmem:[#allocation7 + $0x20] sm:$0xff]
    %v472 = vld [vmem:[#allocation7 + $0x28] sm:$0xff]
    %v473 = vld [vmem:[#allocation7 + $0x30] sm:$0xff]
    %v474 = vld [vmem:[#allocation7 + $0x38] sm:$0xff]
    %v475 = vld [vmem:[#allocation7 + $0x40] sm:$0xff]
    %v476 = vld [vmem:[#allocation7 + $0x48] sm:$0xff]
    %v477 = vld [vmem:[#allocation7 + $0x50] sm:$0xff]
    %v478 = vld [vmem:[#allocation7 + $0x58] sm:$0xff]
    %v479 = vld [vmem:[#allocation7 + $0x60] sm:$0xff]
    %v480 = vld [vmem:[#allocation7 + $0x68] sm:$0xff]
    %v481 = vld [vmem:[#allocation7 + $0x70] sm:$0xff]
    %v482 = vld [vmem:[#allocation7 + $0x78] sm:$0xff]
    %v483 = vld [vmem:[#allocation7 + $0x80] sm:$0xff]
    %v484 = vld [vmem:[#allocation7 + $0x88] sm:$0xff]
    %v485 = vld [vmem:[#allocation7 + $0x90] sm:$0xff]
    %v486 = vld [vmem:[#allocation7 + $0x98] sm:$0xff]
    %v487 = vld [vmem:[#allocation7 + $0xa0] sm:$0xff]
    %v488 = vld [vmem:[#allocation7 + $0xa8] sm:$0xff]
    %v489 = vld [vmem:[#allocation7 + $0xb0] sm:$0xff]
    %v490 = vld [vmem:[#allocation7 + $0xb8] sm:$0xff]
    %v491 = vld [vmem:[#allocation7 + $0xc0] sm:$0xff]
    %v492 = vld [vmem:[#allocation7 + $0xc8] sm:$0xff]
    %v493 = vld [vmem:[#allocation7 + $0xd0] sm:$0xff]
    %v494 = vld [vmem:[#allocation7 + $0xd8] sm:$0xff]
    %v495 = vld [vmem:[#allocation7 + $0xe0] sm:$0xff]
    %v496 = vld [vmem:[#allocation7 + $0xe8] sm:$0xff]
    %v497 = vld [vmem:[#allocation7 + $0xf0] sm:$0xff]
    %v498 = vld [vmem:[#allocation7 + $0xf8] sm:$0xff]
    %v499 = vld [vmem:[%s3] sm:$0x3]
    %v501 = vperm.slane %v499, 0
    %v502 = vperm.slane %v499, 1
    %v537 = vunpack.c.l.b16 %v467
    %v538 = vunpack.c.h.b16 %v467
    %v539 = vunpack.c.l.b16 %v468
    %v540 = vunpack.c.h.b16 %v468
    %v541 = vunpack.c.l.b16 %v469
    %v542 = vunpack.c.h.b16 %v469
    %v543 = vunpack.c.l.b16 %v470
    %v544 = vunpack.c.h.b16 %v470
    %v545 = vunpack.c.l.b16 %v471
    %v546 = vunpack.c.h.b16 %v471
    %v547 = vunpack.c.l.b16 %v472
    %v548 = vunpack.c.h.b16 %v472
    %v549 = vunpack.c.l.b16 %v473
    %v550 = vunpack.c.h.b16 %v473
    %v551 = vunpack.c.l.b16 %v474
    %v552 = vunpack.c.h.b16 %v474
    %v553 = vunpack.c.l.b16 %v475
    %v554 = vunpack.c.h.b16 %v475
    %v555 = vunpack.c.l.b16 %v476
    %v556 = vunpack.c.h.b16 %v476
    %v557 = vunpack.c.l.b16 %v477
    %v558 = vunpack.c.h.b16 %v477
    %v559 = vunpack.c.l.b16 %v478
    %v560 = vunpack.c.h.b16 %v478
    %v561 = vunpack.c.l.b16 %v479
    %v562 = vunpack.c.h.b16 %v479
    %v563 = vunpack.c.l.b16 %v480
    %v564 = vunpack.c.h.b16 %v480
    %v565 = vunpack.c.l.b16 %v481
    %v566 = vunpack.c.h.b16 %v481
    %v567 = vunpack.c.l.b16 %v482
    %v568 = vunpack.c.h.b16 %v482
    %v569 = vunpack.c.l.b16 %v483
    %v570 = vunpack.c.h.b16 %v483
    %v571 = vunpack.c.l.b16 %v484
    %v572 = vunpack.c.h.b16 %v484
    %v573 = vunpack.c.l.b16 %v485
    %v574 = vunpack.c.h.b16 %v485
    %v575 = vunpack.c.l.b16 %v486
    %v576 = vunpack.c.h.b16 %v486
    %v577 = vunpack.c.l.b16 %v487
    %v578 = vunpack.c.h.b16 %v487
    %v579 = vunpack.c.l.b16 %v488
    %v580 = vunpack.c.h.b16 %v488
    %v581 = vunpack.c.l.b16 %v489
    %v582 = vunpack.c.h.b16 %v489
    %v583 = vunpack.c.l.b16 %v490
    %v584 = vunpack.c.h.b16 %v490
    %v585 = vunpack.c.l.b16 %v491
    %v586 = vunpack.c.h.b16 %v491
    %v587 = vunpack.c.l.b16 %v492
    %v588 = vunpack.c.h.b16 %v492
    %v589 = vunpack.c.l.b16 %v493
    %v590 = vunpack.c.h.b16 %v493
    %v591 = vunpack.c.l.b16 %v494
    %v592 = vunpack.c.h.b16 %v494
    %v593 = vunpack.c.l.b16 %v495
    %v594 = vunpack.c.h.b16 %v495
    %v595 = vunpack.c.l.b16 %v496
    %v596 = vunpack.c.h.b16 %v496
    %v597 = vunpack.c.l.b16 %v497
    %v598 = vunpack.c.h.b16 %v497
    %v599 = vunpack.c.l.b16 %v498
    %v600 = vunpack.c.h.b16 %v498
    %v601 = vpack.c.b16 %v539, %v537
    %v602 = vpack.c.b16 %v540, %v538
    %v603 = vpack.c.b16 %v543, %v541
    %v604 = vpack.c.b16 %v544, %v542
    %v605 = vpack.c.b16 %v547, %v545
    %v606 = vpack.c.b16 %v548, %v546
    %v607 = vpack.c.b16 %v551, %v549
    %v608 = vpack.c.b16 %v552, %v550
    %v609 = vpack.c.b16 %v555, %v553
    %v610 = vpack.c.b16 %v556, %v554
    %v611 = vpack.c.b16 %v559, %v557
    %v612 = vpack.c.b16 %v560, %v558
    %v613 = vpack.c.b16 %v563, %v561
    %v614 = vpack.c.b16 %v564, %v562
    %v615 = vpack.c.b16 %v567, %v565
    %v616 = vpack.c.b16 %v568, %v566
    %v617 = vpack.c.b16 %v571, %v569
    %v618 = vpack.c.b16 %v572, %v570
    %v619 = vpack.c.b16 %v575, %v573
    %v620 = vpack.c.b16 %v576, %v574
    %v621 = vpack.c.b16 %v579, %v577
    %v622 = vpack.c.b16 %v580, %v578
    %v623 = vpack.c.b16 %v583, %v581
    %v624 = vpack.c.b16 %v584, %v582
    %v625 = vpack.c.b16 %v587, %v585
    %v626 = vpack.c.b16 %v588, %v586
    %v627 = vpack.c.b16 %v591, %v589
    %v628 = vpack.c.b16 %v592, %v590
    %v629 = vpack.c.b16 %v595, %v593
    %v630 = vpack.c.b16 %v596, %v594
    %v631 = vpack.c.b16 %v599, %v597
    %v632 = vpack.c.b16 %v600, %v598
    %665 = vmatpush.bf16.msra.mxu0 %v615
    %666 = vmatpush.bf16.msra.mxu0 %v613
    %667 = vmatpush.bf16.msra.mxu0 %v611
    %668 = vmatpush.bf16.msra.mxu0 %v609
    %669 = vmatpush.bf16.msra.mxu0 %v607
    %670 = vmatpush.bf16.msra.mxu0 %v605
    %671 = vmatpush.bf16.msra.mxu0 %v603
    %672 = vmatpush.bf16.msra.mxu0 %v601
    %673 = vmatmul.bf16.gmra.mxu0 %v465
    %v674 = vpop.f32.mrf.mxu0
    %v675 = vadd.f32 %v501, %v674
    %v676 = vpop.f32.mrf.mxu0
    %677 = vdwg.mxu0
    %678 = vmatpush.bf16.msra.mxu0 %v631
    %679 = vmatpush.bf16.msra.mxu0 %v629
    %680 = vmatpush.bf16.msra.mxu0 %v627
    %681 = vmatpush.bf16.msra.mxu0 %v625
    %682 = vmatpush.bf16.msra.mxu0 %v623
    %683 = vmatpush.bf16.msra.mxu0 %v621
    %684 = vmatpush.bf16.msra.mxu0 %v619
    %685 = vmatpush.bf16.msra.mxu0 %v617
    %686 = vmatmul.bf16.gmra.mxu0 %v466
    %v687 = vpop.f32.mrf.mxu0
    %v688 = vadd.f32 %v675, %v687
    %v689 = vpop.f32.mrf.mxu0
    %690 = vdwg.mxu0
    %691 = vmatpush.bf16.msra.mxu0 %v616
    %692 = vmatpush.bf16.msra.mxu0 %v614
    %693 = vmatpush.bf16.msra.mxu0 %v612
    %694 = vmatpush.bf16.msra.mxu0 %v610
    %695 = vmatpush.bf16.msra.mxu0 %v608
    %696 = vmatpush.bf16.msra.mxu0 %v606
    %697 = vmatpush.bf16.msra.mxu0 %v604
    %698 = vmatpush.bf16.msra.mxu0 %v602
    %699 = vmatmul.bf16.gmra.mxu0 %v465
    %v700 = vpop.f32.mrf.mxu0
    %v701 = vadd.f32 %v502, %v700
    %v702 = vpop.f32.mrf.mxu0
    %703 = vdwg.mxu0
    %704 = vmatpush.bf16.msra.mxu0 %v632
    %705 = vmatpush.bf16.msra.mxu0 %v630
    %706 = vmatpush.bf16.msra.mxu0 %v628
    %707 = vmatpush.bf16.msra.mxu0 %v626
    %708 = vmatpush.bf16.msra.mxu0 %v624
    %709 = vmatpush.bf16.msra.mxu0 %v622
    %710 = vmatpush.bf16.msra.mxu0 %v620
    %711 = vmatpush.bf16.msra.mxu0 %v618
    %712 = vmatmul.bf16.gmra.mxu0 %v466
    %v713 = vpop.f32.mrf.mxu0
    %v714 = vadd.f32 %v701, %v713
    %v715 = vpop.f32.mrf.mxu0
    %716 = vdwg.mxu0
    %v717 = vxor.u32 %v688, 2147483648
    %v718 = vxor.u32 %v714, 2147483648
    %v719 = vmul.f32 %v717, 1.442695
    %v720 = vpow.pop %v719
    %v721 = vmul.f32 %v718, 1.442695
    %v722 = vpow.pop %v721
    %v723 = vadd.f32 %v720, 1.0
    %v724 = vadd.f32 %v722, 1.0
    %v725 = vrcp.pop %v723
    %v726 = vmul.f32 %v723, %v725
    %v727 = vsub.f32 1.0, %v726
    %v728 = vmul.f32 %v725, %v727
    %v729 = vadd.f32 %v725, %v728
    %vm730 = vweird.f32 %v723
    %vm731 = vweird.f32 %v725
    %vm732 = vmor %vm730, %vm731
    %v733 = vsel %vm732, %v725, %v729
    %v734 = vand.u32 2147483647, %v723
    %vm735 = vcmp.eq.f32.partialorder %v734, 8.507059e+37
    %v736 = vand.u32 %v723, 2147483648
    %v737 = vor.u32 1.1754944e-38, %v736
    %v738 = vsel %vm735, %v737, %v733
    %v739 = vmul.f32 1.0, %v738
    %v740 = vrcp.pop %v724
    %v741 = vmul.f32 %v724, %v740
    %v742 = vsub.f32 1.0, %v741
    %v743 = vmul.f32 %v740, %v742
    %v744 = vadd.f32 %v740, %v743
    %vm745 = vweird.f32 %v724
    %vm746 = vweird.f32 %v740
    %vm747 = vmor %vm745, %vm746
    %v748 = vsel %vm747, %v740, %v744
    %v749 = vand.u32 2147483647, %v724
    %vm750 = vcmp.eq.f32.partialorder %v749, 8.507059e+37
    %v751 = vand.u32 %v724, 2147483648
    %v752 = vor.u32 1.1754944e-38, %v751
    %v753 = vsel %vm750, %v752, %v748
    %v754 = vmul.f32 1.0, %v753
    %v755 = vmul.f32 %v688, %v739
    %v756 = vmul.f32 %v714, %v754
    %v757 = vpack.c.bf16 %v755, %v755
    %v758 = vpack.c.bf16 %v756, %v756
    %v759 = vld [vmem:[#allocation8] sm:$0xff]
    %v760 = vld [vmem:[#allocation8 + $0x8] sm:$0xff]
    %v761 = vld [vmem:[#allocation8 + $0x10] sm:$0xff]
    %v762 = vld [vmem:[#allocation8 + $0x18] sm:$0xff]
    %v763 = vld [vmem:[#allocation8 + $0x20] sm:$0xff]
    %v764 = vld [vmem:[#allocation8 + $0x28] sm:$0xff]
    %v765 = vld [vmem:[#allocation8 + $0x30] sm:$0xff]
    %v766 = vld [vmem:[#allocation8 + $0x38] sm:$0xff]
    %v767 = vld [vmem:[#allocation8 + $0x40] sm:$0xff]
    %v768 = vld [vmem:[#allocation8 + $0x48] sm:$0xff]
    %v769 = vld [vmem:[#allocation8 + $0x50] sm:$0xff]
    %v770 = vld [vmem:[#allocation8 + $0x58] sm:$0xff]
    %v771 = vld [vmem:[#allocation8 + $0x60] sm:$0xff]
    %v772 = vld [vmem:[#allocation8 + $0x68] sm:$0xff]
    %v773 = vld [vmem:[#allocation8 + $0x70] sm:$0xff]
    %v774 = vld [vmem:[#allocation8 + $0x78] sm:$0xff]
    %v775 = vld [vmem:[#allocation8 + $0x80] sm:$0xff]
    %v776 = vld [vmem:[#allocation8 + $0x88] sm:$0xff]
    %v777 = vld [vmem:[#allocation8 + $0x90] sm:$0xff]
    %v778 = vld [vmem:[#allocation8 + $0x98] sm:$0xff]
    %v779 = vld [vmem:[#allocation8 + $0xa0] sm:$0xff]
    %v780 = vld [vmem:[#allocation8 + $0xa8] sm:$0xff]
    %v781 = vld [vmem:[#allocation8 + $0xb0] sm:$0xff]
    %v782 = vld [vmem:[#allocation8 + $0xb8] sm:$0xff]
    %v783 = vld [vmem:[#allocation8 + $0xc0] sm:$0xff]
    %v784 = vld [vmem:[#allocation8 + $0xc8] sm:$0xff]
    %v785 = vld [vmem:[#allocation8 + $0xd0] sm:$0xff]
    %v786 = vld [vmem:[#allocation8 + $0xd8] sm:$0xff]
    %v787 = vld [vmem:[#allocation8 + $0xe0] sm:$0xff]
    %v788 = vld [vmem:[#allocation8 + $0xe8] sm:$0xff]
    %v789 = vld [vmem:[#allocation8 + $0xf0] sm:$0xff]
    %v790 = vld [vmem:[#allocation8 + $0xf8] sm:$0xff]
    %v791 = vpack.c.bf16 %v145, %v145
    %v792 = vld [vmem:[#allocation10] sm:$0xff]
    %v793 = vld [vmem:[#allocation10 + $0x8] sm:$0xff]
    %v794 = vld [vmem:[#allocation10 + $0x10] sm:$0xff]
    %v795 = vld [vmem:[#allocation10 + $0x18] sm:$0xff]
    %v800 = vunpack.c.l.b16 %v792
    %v801 = vunpack.c.h.b16 %v792
    %v802 = vunpack.c.l.b16 %v793
    %v803 = vunpack.c.h.b16 %v793
    %v804 = vunpack.c.l.b16 %v794
    %v805 = vunpack.c.h.b16 %v794
    %v806 = vunpack.c.l.b16 %v795
    %v807 = vunpack.c.h.b16 %v795
    %v808 = vpack.c.b16 %v802, %v800
    %v809 = vpack.c.b16 %v803, %v801
    %v810 = vpack.c.b16 %v806, %v804
    %v811 = vpack.c.b16 %v807, %v805
    %vm816 = vcmask 261120
    %v818 = vsel %vm816, %v791, 0
    %820 = vmatpush.bf16.msra.mxu0 0
    %821 = vmatpush.bf16.msra.mxu0 0
    %822 = vmatpush.bf16.msra.mxu0 0
    %823 = vmatpush.bf16.msra.mxu0 0
    %824 = vmatpush.bf16.msra.mxu0 0
    %825 = vmatpush.bf16.msra.mxu0 0
    %826 = vmatpush.bf16.msra.mxu0 %v810
    %827 = vmatpush.bf16.msra.mxu0 %v808
    %828 = vmatmul.bf16.gmra.mxu0 %v818
    %v829 = vpop.f32.mrf.mxu0
    %v830 = vadd.f32 0.0, %v829
    %v831 = vpop.f32.mrf.mxu0
    %832 = vdwg.mxu0
    %833 = vmatpush.bf16.msra.mxu0 0
    %834 = vmatpush.bf16.msra.mxu0 0
    %835 = vmatpush.bf16.msra.mxu0 0
    %836 = vmatpush.bf16.msra.mxu0 0
    %837 = vmatpush.bf16.msra.mxu0 0
    %838 = vmatpush.bf16.msra.mxu0 0
    %839 = vmatpush.bf16.msra.mxu0 %v811
    %840 = vmatpush.bf16.msra.mxu0 %v809
    %841 = vmatmul.bf16.gmra.mxu0 %v818
    %v842 = vpop.f32.mrf.mxu0
    %v843 = vadd.f32 0.0, %v842
    %v844 = vpop.f32.mrf.mxu0
    %845 = vdwg.mxu0
    %v878 = vunpack.c.l.b16 %v759
    %v879 = vunpack.c.h.b16 %v759
    %v880 = vunpack.c.l.b16 %v760
    %v881 = vunpack.c.h.b16 %v760
    %v882 = vunpack.c.l.b16 %v761
    %v883 = vunpack.c.h.b16 %v761
    %v884 = vunpack.c.l.b16 %v762
    %v885 = vunpack.c.h.b16 %v762
    %v886 = vunpack.c.l.b16 %v763
    %v887 = vunpack.c.h.b16 %v763
    %v888 = vunpack.c.l.b16 %v764
    %v889 = vunpack.c.h.b16 %v764
    %v890 = vunpack.c.l.b16 %v765
    %v891 = vunpack.c.h.b16 %v765
    %v892 = vunpack.c.l.b16 %v766
    %v893 = vunpack.c.h.b16 %v766
    %v894 = vunpack.c.l.b16 %v767
    %v895 = vunpack.c.h.b16 %v767
    %v896 = vunpack.c.l.b16 %v768
    %v897 = vunpack.c.h.b16 %v768
    %v898 = vunpack.c.l.b16 %v769
    %v899 = vunpack.c.h.b16 %v769
    %v900 = vunpack.c.l.b16 %v770
    %v901 = vunpack.c.h.b16 %v770
    %v902 = vunpack.c.l.b16 %v771
    %v903 = vunpack.c.h.b16 %v771
    %v904 = vunpack.c.l.b16 %v772
    %v905 = vunpack.c.h.b16 %v772
    %v906 = vunpack.c.l.b16 %v773
    %v907 = vunpack.c.h.b16 %v773
    %v908 = vunpack.c.l.b16 %v774
    %v909 = vunpack.c.h.b16 %v774
    %v910 = vunpack.c.l.b16 %v775
    %v911 = vunpack.c.h.b16 %v775
    %v912 = vunpack.c.l.b16 %v776
    %v913 = vunpack.c.h.b16 %v776
    %v914 = vunpack.c.l.b16 %v777
    %v915 = vunpack.c.h.b16 %v777
    %v916 = vunpack.c.l.b16 %v778
    %v917 = vunpack.c.h.b16 %v778
    %v918 = vunpack.c.l.b16 %v779
    %v919 = vunpack.c.h.b16 %v779
    %v920 = vunpack.c.l.b16 %v780
    %v921 = vunpack.c.h.b16 %v780
    %v922 = vunpack.c.l.b16 %v781
    %v923 = vunpack.c.h.b16 %v781
    %v924 = vunpack.c.l.b16 %v782
    %v925 = vunpack.c.h.b16 %v782
    %v926 = vunpack.c.l.b16 %v783
    %v927 = vunpack.c.h.b16 %v783
    %v928 = vunpack.c.l.b16 %v784
    %v929 = vunpack.c.h.b16 %v784
    %v930 = vunpack.c.l.b16 %v785
    %v931 = vunpack.c.h.b16 %v785
    %v932 = vunpack.c.l.b16 %v786
    %v933 = vunpack.c.h.b16 %v786
    %v934 = vunpack.c.l.b16 %v787
    %v935 = vunpack.c.h.b16 %v787
    %v936 = vunpack.c.l.b16 %v788
    %v937 = vunpack.c.h.b16 %v788
    %v938 = vunpack.c.l.b16 %v789
    %v939 = vunpack.c.h.b16 %v789
    %v940 = vunpack.c.l.b16 %v790
    %v941 = vunpack.c.h.b16 %v790
    %v942 = vpack.c.b16 %v880, %v878
    %v943 = vpack.c.b16 %v881, %v879
    %v944 = vpack.c.b16 %v884, %v882
    %v945 = vpack.c.b16 %v885, %v883
    %v946 = vpack.c.b16 %v888, %v886
    %v947 = vpack.c.b16 %v889, %v887
    %v948 = vpack.c.b16 %v892, %v890
    %v949 = vpack.c.b16 %v893, %v891
    %v950 = vpack.c.b16 %v896, %v894
    %v951 = vpack.c.b16 %v897, %v895
    %v952 = vpack.c.b16 %v900, %v898
    %v953 = vpack.c.b16 %v901, %v899
    %v954 = vpack.c.b16 %v904, %v902
    %v955 = vpack.c.b16 %v905, %v903
    %v956 = vpack.c.b16 %v908, %v906
    %v957 = vpack.c.b16 %v909, %v907
    %v958 = vpack.c.b16 %v912, %v910
    %v959 = vpack.c.b16 %v913, %v911
    %v960 = vpack.c.b16 %v916, %v914
    %v961 = vpack.c.b16 %v917, %v915
    %v962 = vpack.c.b16 %v920, %v918
    %v963 = vpack.c.b16 %v921, %v919
    %v964 = vpack.c.b16 %v924, %v922
    %v965 = vpack.c.b16 %v925, %v923
    %v966 = vpack.c.b16 %v928, %v926
    %v967 = vpack.c.b16 %v929, %v927
    %v968 = vpack.c.b16 %v932, %v930
    %v969 = vpack.c.b16 %v933, %v931
    %v970 = vpack.c.b16 %v936, %v934
    %v971 = vpack.c.b16 %v937, %v935
    %v972 = vpack.c.b16 %v940, %v938
    %v973 = vpack.c.b16 %v941, %v939
    %1006 = vmatpush.bf16.msra.mxu0 %v956
    %1007 = vmatpush.bf16.msra.mxu0 %v954
    %1008 = vmatpush.bf16.msra.mxu0 %v952
    %1009 = vmatpush.bf16.msra.mxu0 %v950
    %1010 = vmatpush.bf16.msra.mxu0 %v948
    %1011 = vmatpush.bf16.msra.mxu0 %v946
    %1012 = vmatpush.bf16.msra.mxu0 %v944
    %1013 = vmatpush.bf16.msra.mxu0 %v942
    %1014 = vmatmul.bf16.gmra.mxu0 %v757
    %v1015 = vpop.f32.mrf.mxu0
    %v1016 = vadd.f32 %v830, %v1015
    %v1017 = vpop.f32.mrf.mxu0
    %1018 = vdwg.mxu0
    %1019 = vmatpush.bf16.msra.mxu0 %v972
    %1020 = vmatpush.bf16.msra.mxu0 %v970
    %1021 = vmatpush.bf16.msra.mxu0 %v968
    %1022 = vmatpush.bf16.msra.mxu0 %v966
    %1023 = vmatpush.bf16.msra.mxu0 %v964
    %1024 = vmatpush.bf16.msra.mxu0 %v962
    %1025 = vmatpush.bf16.msra.mxu0 %v960
    %1026 = vmatpush.bf16.msra.mxu0 %v958
    %1027 = vmatmul.bf16.gmra.mxu0 %v758
    %v1028 = vpop.f32.mrf.mxu0
    %v1029 = vadd.f32 %v1016, %v1028
    %v1030 = vpop.f32.mrf.mxu0
    %1031 = vdwg.mxu0
    %1032 = vmatpush.bf16.msra.mxu0 %v957
    %1033 = vmatpush.bf16.msra.mxu0 %v955
    %1034 = vmatpush.bf16.msra.mxu0 %v953
    %1035 = vmatpush.bf16.msra.mxu0 %v951
    %1036 = vmatpush.bf16.msra.mxu0 %v949
    %1037 = vmatpush.bf16.msra.mxu0 %v947
    %1038 = vmatpush.bf16.msra.mxu0 %v945
    %1039 = vmatpush.bf16.msra.mxu0 %v943
    %1040 = vmatmul.bf16.gmra.mxu0 %v757
    %v1041 = vpop.f32.mrf.mxu0
    %v1042 = vadd.f32 %v843, %v1041
    %v1043 = vpop.f32.mrf.mxu0
    %1044 = vdwg.mxu0
    %1045 = vmatpush.bf16.msra.mxu0 %v973
    %1046 = vmatpush.bf16.msra.mxu0 %v971
    %1047 = vmatpush.bf16.msra.mxu0 %v969
    %1048 = vmatpush.bf16.msra.mxu0 %v967
    %1049 = vmatpush.bf16.msra.mxu0 %v965
    %1050 = vmatpush.bf16.msra.mxu0 %v963
    %1051 = vmatpush.bf16.msra.mxu0 %v961
    %1052 = vmatpush.bf16.msra.mxu0 %v959
    %1053 = vmatmul.bf16.gmra.mxu0 %v758
    %v1054 = vpop.f32.mrf.mxu0
    %v1055 = vadd.f32 %v1042, %v1054
    %v1056 = vpop.f32.mrf.mxu0
    %1057 = vdwg.mxu0
    %v1058 = vld [vmem:[%s6] sm:$0x3]
    %v1060 = vperm.slane %v1058, 0
    %v1061 = vperm.slane %v1058, 1
    %v1064 = vadd.f32 %v1029, %v1060
    %v1065 = vadd.f32 %v1055, %v1061
    %v1066 = vmax.f32 %v1064, 0.0
    %v1067 = vmax.f32 %v1065, 0.0
    %v1068 = vpack.c.bf16 %v1066, %v1066
    %v1069 = vpack.c.bf16 %v1067, %v1067
    %v1070 = vld [vmem:[#allocation11] sm:$0xff]
    %v1071 = vld [vmem:[#allocation11 + $0x8] sm:$0xff]
    %v1072 = vld [vmem:[#allocation11 + $0x10] sm:$0xff]
    %v1073 = vld [vmem:[#allocation11 + $0x18] sm:$0xff]
    %v1074 = vld [vmem:[#allocation11 + $0x20] sm:$0xff]
    %v1075 = vld [vmem:[#allocation11 + $0x28] sm:$0xff]
    %v1076 = vld [vmem:[#allocation11 + $0x30] sm:$0xff]
    %v1077 = vld [vmem:[#allocation11 + $0x38] sm:$0xff]
    %v1078 = vld [vmem:[#allocation11 + $0x40] sm:$0xff]
    %v1079 = vld [vmem:[#allocation11 + $0x48] sm:$0xff]
    %v1080 = vld [vmem:[#allocation11 + $0x50] sm:$0xff]
    %v1081 = vld [vmem:[#allocation11 + $0x58] sm:$0xff]
    %v1082 = vld [vmem:[#allocation11 + $0x60] sm:$0xff]
    %v1083 = vld [vmem:[#allocation11 + $0x68] sm:$0xff]
    %v1084 = vld [vmem:[#allocation11 + $0x70] sm:$0xff]
    %v1085 = vld [vmem:[#allocation11 + $0x78] sm:$0xff]
    %v1086 = vld [vmem:[#allocation11 + $0x80] sm:$0xff]
    %v1087 = vld [vmem:[#allocation11 + $0x88] sm:$0xff]
    %v1088 = vld [vmem:[#allocation11 + $0x90] sm:$0xff]
    %v1089 = vld [vmem:[#allocation11 + $0x98] sm:$0xff]
    %v1090 = vld [vmem:[#allocation11 + $0xa0] sm:$0xff]
    %v1091 = vld [vmem:[#allocation11 + $0xa8] sm:$0xff]
    %v1092 = vld [vmem:[#allocation11 + $0xb0] sm:$0xff]
    %v1093 = vld [vmem:[#allocation11 + $0xb8] sm:$0xff]
    %v1094 = vld [vmem:[#allocation11 + $0xc0] sm:$0xff]
    %v1095 = vld [vmem:[#allocation11 + $0xc8] sm:$0xff]
    %v1096 = vld [vmem:[#allocation11 + $0xd0] sm:$0xff]
    %v1097 = vld [vmem:[#allocation11 + $0xd8] sm:$0xff]
    %v1098 = vld [vmem:[#allocation11 + $0xe0] sm:$0xff]
    %v1099 = vld [vmem:[#allocation11 + $0xe8] sm:$0xff]
    %v1100 = vld [vmem:[#allocation11 + $0xf0] sm:$0xff]
    %v1101 = vld [vmem:[#allocation11 + $0xf8] sm:$0xff]
    %v1102 = vld [vmem:[%s8] sm:$0x3]
    %v1104 = vperm.slane %v1102, 0
    %v1105 = vperm.slane %v1102, 1
    %v1140 = vunpack.c.l.b16 %v1070
    %v1141 = vunpack.c.h.b16 %v1070
    %v1142 = vunpack.c.l.b16 %v1071
    %v1143 = vunpack.c.h.b16 %v1071
    %v1144 = vunpack.c.l.b16 %v1072
    %v1145 = vunpack.c.h.b16 %v1072
    %v1146 = vunpack.c.l.b16 %v1073
    %v1147 = vunpack.c.h.b16 %v1073
    %v1148 = vunpack.c.l.b16 %v1074
    %v1149 = vunpack.c.h.b16 %v1074
    %v1150 = vunpack.c.l.b16 %v1075
    %v1151 = vunpack.c.h.b16 %v1075
    %v1152 = vunpack.c.l.b16 %v1076
    %v1153 = vunpack.c.h.b16 %v1076
    %v1154 = vunpack.c.l.b16 %v1077
    %v1155 = vunpack.c.h.b16 %v1077
    %v1156 = vunpack.c.l.b16 %v1078
    %v1157 = vunpack.c.h.b16 %v1078
    %v1158 = vunpack.c.l.b16 %v1079
    %v1159 = vunpack.c.h.b16 %v1079
    %v1160 = vunpack.c.l.b16 %v1080
    %v1161 = vunpack.c.h.b16 %v1080
    %v1162 = vunpack.c.l.b16 %v1081
    %v1163 = vunpack.c.h.b16 %v1081
    %v1164 = vunpack.c.l.b16 %v1082
    %v1165 = vunpack.c.h.b16 %v1082
    %v1166 = vunpack.c.l.b16 %v1083
    %v1167 = vunpack.c.h.b16 %v1083
    %v1168 = vunpack.c.l.b16 %v1084
    %v1169 = vunpack.c.h.b16 %v1084
    %v1170 = vunpack.c.l.b16 %v1085
    %v1171 = vunpack.c.h.b16 %v1085
    %v1172 = vunpack.c.l.b16 %v1086
    %v1173 = vunpack.c.h.b16 %v1086
    %v1174 = vunpack.c.l.b16 %v1087
    %v1175 = vunpack.c.h.b16 %v1087
    %v1176 = vunpack.c.l.b16 %v1088
    %v1177 = vunpack.c.h.b16 %v1088
    %v1178 = vunpack.c.l.b16 %v1089
    %v1179 = vunpack.c.h.b16 %v1089
    %v1180 = vunpack.c.l.b16 %v1090
    %v1181 = vunpack.c.h.b16 %v1090
    %v1182 = vunpack.c.l.b16 %v1091
    %v1183 = vunpack.c.h.b16 %v1091
    %v1184 = vunpack.c.l.b16 %v1092
    %v1185 = vunpack.c.h.b16 %v1092
    %v1186 = vunpack.c.l.b16 %v1093
    %v1187 = vunpack.c.h.b16 %v1093
    %v1188 = vunpack.c.l.b16 %v1094
    %v1189 = vunpack.c.h.b16 %v1094
    %v1190 = vunpack.c.l.b16 %v1095
    %v1191 = vunpack.c.h.b16 %v1095
    %v1192 = vunpack.c.l.b16 %v1096
    %v1193 = vunpack.c.h.b16 %v1096
    %v1194 = vunpack.c.l.b16 %v1097
    %v1195 = vunpack.c.h.b16 %v1097
    %v1196 = vunpack.c.l.b16 %v1098
    %v1197 = vunpack.c.h.b16 %v1098
    %v1198 = vunpack.c.l.b16 %v1099
    %v1199 = vunpack.c.h.b16 %v1099
    %v1200 = vunpack.c.l.b16 %v1100
    %v1201 = vunpack.c.h.b16 %v1100
    %v1202 = vunpack.c.l.b16 %v1101
    %v1203 = vunpack.c.h.b16 %v1101
    %v1204 = vpack.c.b16 %v1142, %v1140
    %v1205 = vpack.c.b16 %v1143, %v1141
    %v1206 = vpack.c.b16 %v1146, %v1144
    %v1207 = vpack.c.b16 %v1147, %v1145
    %v1208 = vpack.c.b16 %v1150, %v1148
    %v1209 = vpack.c.b16 %v1151, %v1149
    %v1210 = vpack.c.b16 %v1154, %v1152
    %v1211 = vpack.c.b16 %v1155, %v1153
    %v1212 = vpack.c.b16 %v1158, %v1156
    %v1213 = vpack.c.b16 %v1159, %v1157
    %v1214 = vpack.c.b16 %v1162, %v1160
    %v1215 = vpack.c.b16 %v1163, %v1161
    %v1216 = vpack.c.b16 %v1166, %v1164
    %v1217 = vpack.c.b16 %v1167, %v1165
    %v1218 = vpack.c.b16 %v1170, %v1168
    %v1219 = vpack.c.b16 %v1171, %v1169
    %v1220 = vpack.c.b16 %v1174, %v1172
    %v1221 = vpack.c.b16 %v1175, %v1173
    %v1222 = vpack.c.b16 %v1178, %v1176
    %v1223 = vpack.c.b16 %v1179, %v1177
    %v1224 = vpack.c.b16 %v1182, %v1180
    %v1225 = vpack.c.b16 %v1183, %v1181
    %v1226 = vpack.c.b16 %v1186, %v1184
    %v1227 = vpack.c.b16 %v1187, %v1185
    %v1228 = vpack.c.b16 %v1190, %v1188
    %v1229 = vpack.c.b16 %v1191, %v1189
    %v1230 = vpack.c.b16 %v1194, %v1192
    %v1231 = vpack.c.b16 %v1195, %v1193
    %v1232 = vpack.c.b16 %v1198, %v1196
    %v1233 = vpack.c.b16 %v1199, %v1197
    %v1234 = vpack.c.b16 %v1202, %v1200
    %v1235 = vpack.c.b16 %v1203, %v1201
    %1268 = vmatpush.bf16.msra.mxu0 %v1218
    %1269 = vmatpush.bf16.msra.mxu0 %v1216
    %1270 = vmatpush.bf16.msra.mxu0 %v1214
    %1271 = vmatpush.bf16.msra.mxu0 %v1212
    %1272 = vmatpush.bf16.msra.mxu0 %v1210
    %1273 = vmatpush.bf16.msra.mxu0 %v1208
    %1274 = vmatpush.bf16.msra.mxu0 %v1206
    %1275 = vmatpush.bf16.msra.mxu0 %v1204
    %1276 = vmatmul.bf16.gmra.mxu0 %v1068
    %v1277 = vpop.f32.mrf.mxu0
    %v1278 = vadd.f32 %v1104, %v1277
    %v1279 = vpop.f32.mrf.mxu0
    %1280 = vdwg.mxu0
    %1281 = vmatpush.bf16.msra.mxu0 %v1234
    %1282 = vmatpush.bf16.msra.mxu0 %v1232
    %1283 = vmatpush.bf16.msra.mxu0 %v1230
    %1284 = vmatpush.bf16.msra.mxu0 %v1228
    %1285 = vmatpush.bf16.msra.mxu0 %v1226
    %1286 = vmatpush.bf16.msra.mxu0 %v1224
    %1287 = vmatpush.bf16.msra.mxu0 %v1222
    %1288 = vmatpush.bf16.msra.mxu0 %v1220
    %1289 = vmatmul.bf16.gmra.mxu0 %v1069
    %v1290 = vpop.f32.mrf.mxu0
    %v1291 = vadd.f32 %v1278, %v1290
    %v1292 = vpop.f32.mrf.mxu0
    %1293 = vdwg.mxu0
    %1294 = vmatpush.bf16.msra.mxu0 %v1219
    %1295 = vmatpush.bf16.msra.mxu0 %v1217
    %1296 = vmatpush.bf16.msra.mxu0 %v1215
    %1297 = vmatpush.bf16.msra.mxu0 %v1213
    %1298 = vmatpush.bf16.msra.mxu0 %v1211
    %1299 = vmatpush.bf16.msra.mxu0 %v1209
    %1300 = vmatpush.bf16.msra.mxu0 %v1207
    %1301 = vmatpush.bf16.msra.mxu0 %v1205
    %1302 = vmatmul.bf16.gmra.mxu0 %v1068
    %v1303 = vpop.f32.mrf.mxu0
    %v1304 = vadd.f32 %v1105, %v1303
    %v1305 = vpop.f32.mrf.mxu0
    %1306 = vdwg.mxu0
    %1307 = vmatpush.bf16.msra.mxu0 %v1235
    %1308 = vmatpush.bf16.msra.mxu0 %v1233
    %1309 = vmatpush.bf16.msra.mxu0 %v1231
    %1310 = vmatpush.bf16.msra.mxu0 %v1229
    %1311 = vmatpush.bf16.msra.mxu0 %v1227
    %1312 = vmatpush.bf16.msra.mxu0 %v1225
    %1313 = vmatpush.bf16.msra.mxu0 %v1223
    %1314 = vmatpush.bf16.msra.mxu0 %v1221
    %1315 = vmatmul.bf16.gmra.mxu0 %v1069
    %v1316 = vpop.f32.mrf.mxu0
    %v1317 = vadd.f32 %v1304, %v1316
    %v1318 = vpop.f32.mrf.mxu0
    %1319 = vdwg.mxu0
    %v1320 = vmax.f32 %v1291, 0.0
    %v1321 = vmax.f32 %v1317, 0.0
    %v1322 = vpack.c.bf16 %v1320, %v1320
    %v1323 = vpack.c.bf16 %v1321, %v1321
    %v1324 = vld [vmem:[#allocation13] sm:$0xf]
    %v1325 = vld [vmem:[#allocation13 + $0x4] sm:$0xf]
    %v1326 = vld [vmem:[#allocation13 + $0x8] sm:$0xf]
    %v1327 = vld [vmem:[#allocation13 + $0xc] sm:$0xf]
    %v1328 = vld [vmem:[#allocation13 + $0x10] sm:$0xf]
    %v1329 = vld [vmem:[#allocation13 + $0x14] sm:$0xf]
    %v1330 = vld [vmem:[#allocation13 + $0x18] sm:$0xf]
    %v1331 = vld [vmem:[#allocation13 + $0x1c] sm:$0xf]
    %v1332 = vld [vmem:[#allocation13 + $0x20] sm:$0xf]
    %v1333 = vld [vmem:[#allocation13 + $0x24] sm:$0xf]
    %v1334 = vld [vmem:[#allocation13 + $0x28] sm:$0xf]
    %v1335 = vld [vmem:[#allocation13 + $0x2c] sm:$0xf]
    %v1336 = vld [vmem:[#allocation13 + $0x30] sm:$0xf]
    %v1337 = vld [vmem:[#allocation13 + $0x34] sm:$0xf]
    %v1338 = vld [vmem:[#allocation13 + $0x38] sm:$0xf]
    %v1339 = vld [vmem:[#allocation13 + $0x3c] sm:$0xf]
    %v1340 = vld [vmem:[#allocation13 + $0x40] sm:$0xf]
    %v1341 = vld [vmem:[#allocation13 + $0x44] sm:$0xf]
    %v1342 = vld [vmem:[#allocation13 + $0x48] sm:$0xf]
    %v1343 = vld [vmem:[#allocation13 + $0x4c] sm:$0xf]
    %v1344 = vld [vmem:[#allocation13 + $0x50] sm:$0xf]
    %v1345 = vld [vmem:[#allocation13 + $0x54] sm:$0xf]
    %v1346 = vld [vmem:[#allocation13 + $0x58] sm:$0xf]
    %v1347 = vld [vmem:[#allocation13 + $0x5c] sm:$0xf]
    %v1348 = vld [vmem:[#allocation13 + $0x60] sm:$0xf]
    %v1349 = vld [vmem:[#allocation13 + $0x64] sm:$0xf]
    %v1350 = vld [vmem:[#allocation13 + $0x68] sm:$0xf]
    %v1351 = vld [vmem:[#allocation13 + $0x6c] sm:$0xf]
    %v1352 = vld [vmem:[#allocation13 + $0x70] sm:$0xf]
    %v1353 = vld [vmem:[#allocation13 + $0x74] sm:$0xf]
    %v1354 = vld [vmem:[#allocation13 + $0x78] sm:$0xf]
    %v1355 = vld [vmem:[#allocation13 + $0x7c] sm:$0xf]
    %v1356 = vld [vmem:[%s10] sm:$0x1]
    %v1358 = vperm.slane %v1356, 0
    %v1392 = vunpack.c.l.b16 %v1324
    %v1393 = vunpack.c.l.b16 %v1325
    %v1394 = vunpack.c.l.b16 %v1326
    %v1395 = vunpack.c.l.b16 %v1327
    %v1396 = vunpack.c.l.b16 %v1328
    %v1397 = vunpack.c.l.b16 %v1329
    %v1398 = vunpack.c.l.b16 %v1330
    %v1399 = vunpack.c.l.b16 %v1331
    %v1400 = vunpack.c.l.b16 %v1332
    %v1401 = vunpack.c.l.b16 %v1333
    %v1402 = vunpack.c.l.b16 %v1334
    %v1403 = vunpack.c.l.b16 %v1335
    %v1404 = vunpack.c.l.b16 %v1336
    %v1405 = vunpack.c.l.b16 %v1337
    %v1406 = vunpack.c.l.b16 %v1338
    %v1407 = vunpack.c.l.b16 %v1339
    %v1408 = vunpack.c.l.b16 %v1340
    %v1409 = vunpack.c.l.b16 %v1341
    %v1410 = vunpack.c.l.b16 %v1342
    %v1411 = vunpack.c.l.b16 %v1343
    %v1412 = vunpack.c.l.b16 %v1344
    %v1413 = vunpack.c.l.b16 %v1345
    %v1414 = vunpack.c.l.b16 %v1346
    %v1415 = vunpack.c.l.b16 %v1347
    %v1416 = vunpack.c.l.b16 %v1348
    %v1417 = vunpack.c.l.b16 %v1349
    %v1418 = vunpack.c.l.b16 %v1350
    %v1419 = vunpack.c.l.b16 %v1351
    %v1420 = vunpack.c.l.b16 %v1352
    %v1421 = vunpack.c.l.b16 %v1353
    %v1422 = vunpack.c.l.b16 %v1354
    %v1423 = vunpack.c.l.b16 %v1355
    %v1424 = vpack.c.b16 %v1393, %v1392
    %v1425 = vpack.c.b16 %v1395, %v1394
    %v1426 = vpack.c.b16 %v1397, %v1396
    %v1427 = vpack.c.b16 %v1399, %v1398
    %v1428 = vpack.c.b16 %v1401, %v1400
    %v1429 = vpack.c.b16 %v1403, %v1402
    %v1430 = vpack.c.b16 %v1405, %v1404
    %v1431 = vpack.c.b16 %v1407, %v1406
    %v1432 = vpack.c.b16 %v1409, %v1408
    %v1433 = vpack.c.b16 %v1411, %v1410
    %v1434 = vpack.c.b16 %v1413, %v1412
    %v1435 = vpack.c.b16 %v1415, %v1414
    %v1436 = vpack.c.b16 %v1417, %v1416
    %v1437 = vpack.c.b16 %v1419, %v1418
    %v1438 = vpack.c.b16 %v1421, %v1420
    %v1439 = vpack.c.b16 %v1423, %v1422
    %1456 = vmatpush.bf16.msra.mxu0 %v1431
    %1457 = vmatpush.bf16.msra.mxu0 %v1430
    %1458 = vmatpush.bf16.msra.mxu0 %v1429
    %1459 = vmatpush.bf16.msra.mxu0 %v1428
    %1460 = vmatpush.bf16.msra.mxu0 %v1427
    %1461 = vmatpush.bf16.msra.mxu0 %v1426
    %1462 = vmatpush.bf16.msra.mxu0 %v1425
    %1463 = vmatpush.bf16.msra.mxu0 %v1424
    %1464 = vmatmul.bf16.gmra.mxu0 %v1322
    %v1465 = vpop.f32.mrf.mxu0
    %v1466 = vadd.f32 %v1358, %v1465
    %v1467 = vpop.f32.mrf.mxu0
    %1468 = vdwg.mxu0
    %1469 = vmatpush.bf16.msra.mxu0 %v1439
    %1470 = vmatpush.bf16.msra.mxu0 %v1438
    %1471 = vmatpush.bf16.msra.mxu0 %v1437
    %1472 = vmatpush.bf16.msra.mxu0 %v1436
    %1473 = vmatpush.bf16.msra.mxu0 %v1435
    %1474 = vmatpush.bf16.msra.mxu0 %v1434
    %1475 = vmatpush.bf16.msra.mxu0 %v1433
    %1476 = vmatpush.bf16.msra.mxu0 %v1432
    %1477 = vmatmul.bf16.gmra.mxu0 %v1323
    %v1478 = vpop.f32.mrf.mxu0
    %v1479 = vadd.f32 %v1466, %v1478
    %v1480 = vpop.f32.mrf.mxu0
    %1481 = vdwg.mxu0
    %v1482 = vpack.c.bf16 %v1479, %v1479
    %1483 = vst [vmem:[#allocation14] sm:$0xf] %v1482
    // Predicated region
    $region74: #{tpu_custom_call.1} parent=1 // pred_check
      _
    $region75: #{tpu_custom_call.1} parent=1 // pred_check_branch
      %1485 = sbr.rel (0) target = $region77
    $region76: #{tpu_custom_call.1} parent=1 // pred_region
      %1487 = vsyncadd [#allocation4], 0
      %s1489 = sshll.u32 [#allocation14], 4
      %s1490 = int_to_ptr.vmem [resolvable:$true] %s1489
      %s1491 = sshll.u32 %s11, 4
      %s1492 = int_to_ptr.hbm [resolvable:$true] %s1491
      %1494 = dma.vmem_to_hbm [thread:$0]  %s1490, 64, %s1492, [#allocation4]
    $region77: #{tpu_custom_call.1} parent=1 // pred_fallthru
      _
    // Predicated region
    $region78: #{tpu_custom_call.1} parent=1 // pred_check
      _
    $region79: #{tpu_custom_call.1} parent=1 // pred_check_branch
      %1496 = sbr.rel (0) target = $region81
    $region80: #{tpu_custom_call.1} parent=1 // pred_region
      %1498 = dma.done [#allocation4], 64
    $region81: #{tpu_custom_call.1} parent=1 // pred_fallthru
      _
    %1499 = vsyncpa [#allocation3], 1
    %1500 = vsyncpa [#allocation6], 1
    %1501 = vsyncpa [#allocation9], 1
    %1502 = vsyncpa [#allocation12], 1
    %1503 = vsyncpa [#allocation4], 1

</llo_original>
